<compile_context>
chip_gen: v7x
topology: tpu7x:2x2x1
jax: 0.10.0
libtpu: 0.0.40
codegen_flags: <defaults>
</compile_context>

<pallas_src>
import functools
import math

import jax
import jax.numpy as jnp
from jax.experimental import pallas as pl
from jax.experimental.pallas import tpu as pltpu

EPS = 1e-4  # softmax_kernel eps


# --------------------------------------------------------------------------- #
# Pallas kernel: one grid point == one batch element, all heads at once.
# Blocks: q/k/v/o (1, H*N, D) f32; mask (1, H*N, 1) f32; proj (M, D) bf16.
# --------------------------------------------------------------------------- #
def _performer_batch_kernel(q_ref, k_ref, v_ref, mask_ref, proj_ref, o_ref, *,
                            num_heads):
    hn, d = q_ref.shape[1], q_ref.shape[2]
    m = proj_ref.shape[0]
    h = num_heads
    n = hn // h

    # (Q / d**0.25) from the module forward, times d**-0.25 from softmax_kernel
    # (normalize_data=True)  ->  a single d**-0.5 scale on Q and K.
    data_scale = float(d) ** -0.5
    ratio = float(m) ** -0.5

    mask = mask_ref[0]                                 # [HN, 1] f32
    q_n = q_ref[0] * data_scale                        # [HN, D] f32
    k_n = k_ref[0] * (data_scale * mask)               # [HN, D] f32
    v = v_ref[0] * mask                                # [HN, D] f32

    diag_q = 0.5 * jnp.sum(q_n * q_n, axis=-1, keepdims=True)  # [HN, 1]
    diag_k = 0.5 * jnp.sum(k_n * k_n, axis=-1, keepdims=True)  # [HN, 1]

    # --- random-feature projections: two MXU matmuls, no concat/slice copies.
    proj_b = proj_ref[...]                             # bf16 (pre-cast in wrapper)
    contract_last = (((1,), (1,)), ((), ()))
    q_dash = jax.lax.dot_general(                      # [HN, M] f32
        q_n.astype(jnp.bfloat16), proj_b, contract_last,
        preferred_element_type=jnp.float32)
    k_dash = jax.lax.dot_general(                      # [HN, M] f32
        k_n.astype(jnp.bfloat16), proj_b, contract_last,
        preferred_element_type=jnp.float32)

    # --- feature maps for the full head-flattened slab (single EUP pass each).
    q_max = jnp.max(q_dash, axis=-1, keepdims=True)                    # [HN, 1]
    q_prime = ratio * (jnp.exp(q_dash - diag_q - q_max) + EPS)         # [HN, M]

    # per-(batch, head) key max via a sublane-aligned [H, N, M] view.
    # TODO(synk): lucidrains stabilizes keys with a GLOBAL max over all (b, h);
    # per-head max is used here (shift cancels in the normalization up to EPS).
    k3 = k_dash.reshape(h, n, m)
    k_max_h = jnp.max(jnp.max(k3, axis=2, keepdims=True),
                      axis=1, keepdims=True)                           # [H, 1, 1]
    k_max = jnp.broadcast_to(k_max_h, (h, n, 1)).reshape(hn, 1)        # [HN, 1]
    k_prime = ratio * (jnp.exp(k_dash - diag_k - k_max) + EPS)         # [HN, M]

    qp_b = q_prime.astype(jnp.bfloat16)                                # [HN, M]
    kp_b = k_prime.astype(jnp.bfloat16)                                # [HN, M]
    # ones column so the denominator (k_sum) rides for free in the context matmul
    # (D=32 -> D+1=33 still one 128-lane tile).
    v_aug = jnp.concatenate(
        [v.astype(jnp.bfloat16), jnp.ones((hn, 1), jnp.bfloat16)],
        axis=-1)                                                       # [HN, D+1]

    # --- per-head non-causal linear attention (static unrolled loop; the LLO
    # scheduler interleaves one head's pops with the other head's pushes).
    for hh in range(h):
        lo = hh * n
        qp = qp_b[lo:lo + n]                                           # [N, M]
        kp = kp_b[lo:lo + n]                                           # [N, M]
        va = v_aug[lo:lo + n]                                          # [N, D+1]

        # context_aug = k'^T @ [v | 1]  -> [M, D+1]; last column == k_sum.
        ctx = jax.lax.dot_general(
            kp, va, (((0,), (0,)), ((), ())),
            preferred_element_type=jnp.float32)
        # numerator and denominator from one matmul: q' @ ctx -> [N, D+1].
        nd = jnp.dot(qp, ctx.astype(jnp.bfloat16),
                     preferred_element_type=jnp.float32)
        numer = nd[:, :d]                                              # [N, D]
        denom = nd[:, d:d + 1]                                         # [N, 1]

        out_h = numer * pl.reciprocal(denom, approx=True)
        o_ref[0, lo:lo + n, :] = out_h.astype(o_ref.dtype)


def performer_attention(Q, K, V, mask, proj):
    """Q, K, V: [B, H, N, D]; mask: [B, N]; proj: [M, D] -> [B, H, N, D]."""
    B, H, N, D = Q.shape
    M = proj.shape[0]
    HN = H * N

    # Head-flattened [B, H*N, D] views (free reshapes: memory is contiguous).
    Qf = Q.reshape(B, HN, D)
    Kf = K.reshape(B, HN, D)
    Vf = V.reshape(B, HN, D)
    # mask tiled per head (row h*N + n uses mask[b, n]); lane-friendly [B, HN, 1].
    maskf = jnp.tile(mask.astype(jnp.float32), (1, H)).reshape(B, HN, 1)
    # pre-cast proj to bf16: halves its per-step DMA, removes in-kernel cast.
    proj_b = proj.astype(jnp.bfloat16)

    kernel = functools.partial(_performer_batch_kernel, num_heads=H)

    grid_spec = pltpu.PrefetchScalarGridSpec(
        num_scalar_prefetch=0,
        grid=(B,),  # one batch per step; >=2 steps keeps both v7x TCs busy.
        in_specs=[
            pl.BlockSpec((1, HN, D), lambda b: (b, 0, 0)),  # Q
            pl.BlockSpec((1, HN, D), lambda b: (b, 0, 0)),  # K
            pl.BlockSpec((1, HN, D), lambda b: (b, 0, 0)),  # V
            pl.BlockSpec((1, HN, 1), lambda b: (b, 0, 0)),  # mask (tiled per head)
            pl.BlockSpec((M, D), lambda b: (0, 0)),         # projection (bf16)
        ],
        out_specs=pl.BlockSpec((1, HN, D), lambda b: (b, 0, 0)),
    )
    # VMEM per step: 4 x (HN*D*4 B) + [HN, M] temporaries << 1 MiB double-buffered;
    # far under every generation's scoped VMEM default, so no vmem_limit_bytes.
    out = pl.pallas_call(
        kernel,
        out_shape=jax.ShapeDtypeStruct((B, HN, D), Q.dtype),
        grid_spec=grid_spec,
        compiler_params=pltpu.CompilerParams(
            dimension_semantics=("parallel",)),
    )(Qf, Kf, Vf, maskf, proj_b)
    return out.reshape(B, H, N, D)


# --------------------------------------------------------------------------- #
# Deterministic parameter init (gaussian orthogonal random features), plain JAX.
# --------------------------------------------------------------------------- #
def gaussian_orthogonal_random_matrix(key, nb_rows, nb_cols):
    nb_full_blocks = nb_rows // nb_cols
    keys = jax.random.split(key, nb_full_blocks + 2)
    blocks = []
    for i in range(nb_full_blocks):
        g = jax.random.normal(keys[i], (nb_cols, nb_cols), jnp.float32)
        q, _ = jnp.linalg.qr(g)
        blocks.append(q.T)
    rem = nb_rows - nb_full_blocks * nb_cols
    if rem > 0:
        g = jax.random.normal(keys[-2], (nb_cols, nb_cols), jnp.float32)
        q, _ = jnp.linalg.qr(g)
        blocks.append(q.T[:rem])
    mat = jnp.concatenate(blocks, axis=0)
    # scaling=0: row norms of an iid Gaussian matrix
    multiplier = jnp.linalg.norm(
        jax.random.normal(keys[-1], (nb_rows, nb_cols), jnp.float32), axis=1)
    return multiplier[:, None] * mat


# Pure-JAX f32 reference (same stabilization convention) for a sanity check.
def performer_reference(Q, K, V, mask, proj):
    d = Q.shape[-1]
    m = proj.shape[0]
    outer = d ** (-0.25)
    dn = d ** (-0.25)
    ratio = m ** (-0.5)
    msk = mask[:, None, :, None]
    q = Q * outer
    k = K * outer * msk
    v = V * msk
    q_dash = jnp.einsum('bhnd,md->bhnm', q * dn, proj)
    k_dash = jnp.einsum('bhnd,md->bhnm', k * dn, proj)
    diag_q = 0.5 * jnp.sum(q * q, -1, keepdims=True) * dn ** 2
    diag_k = 0.5 * jnp.sum(k * k, -1, keepdims=True) * dn ** 2
    q_p = ratio * (jnp.exp(q_dash - diag_q
                           - jnp.max(q_dash, -1, keepdims=True)) + EPS)
    k_p = ratio * (jnp.exp(k_dash - diag_k
                           - jnp.max(k_dash, axis=(-1, -2), keepdims=True)) + EPS)
    k_sum = k_p.sum(-2)
    d_inv = 1.0 / jnp.einsum('bhnm,bhm->bhn', q_p, k_sum)
    ctx = jnp.einsum('bhnm,bhnd->bhmd', k_p, v)
    return jnp.einsum('bhnm,bhmd->bhnd', q_p, ctx) * d_inv[..., None]


if __name__ == "__main__":
    B, H, N, D, M = 2, 2, 128, 32, 64  # head_dim=32, rp_dim=64

    key = jax.random.PRNGKey(0)
    kq, kk, kv, kp = jax.random.split(key, 4)
    Q = jax.random.normal(kq, (B, H, N, D), jnp.float32)
    K = jax.random.normal(kk, (B, H, N, D), jnp.float32)
    V = jax.random.normal(kv, (B, H, N, D), jnp.float32)
    # batch 0: full length; batch 1: only first 96 tokens valid
    lengths = jnp.array([[N], [96]], dtype=jnp.int32)
    mask = (jnp.arange(N)[None, :] < lengths).astype(jnp.float32)

    proj = gaussian_orthogonal_random_matrix(kp, M, D)

    out = performer_attention(Q, K, V, mask, proj)
    out = jax.block_until_ready(out)

    ref = performer_reference(Q, K, V, mask, proj)
    assert out.shape == (B, H, N, D)
    assert bool(jnp.all(jnp.isfinite(out)))
    # bf16 MXU operands (f32 accumulate) -> relaxed tolerance vs. the f32 reference.
    assert bool(jnp.allclose(out, ref, rtol=2e-2, atol=2e-2)), \
        f"max abs diff = {float(jnp.max(jnp.abs(out - ref)))}"

    print("KERNEL_OK")
</pallas_src>

<mosaic_0001>
module attributes {stable_mosaic.version = 11 : i64} {
  func.func @_performer_batch_kernel(%arg0: i32, %arg1: memref<1x256x32xf32, #tpu.memory_space<vmem>>, %arg2: memref<1x256x32xf32, #tpu.memory_space<vmem>>, %arg3: memref<1x256x32xf32, #tpu.memory_space<vmem>>, %arg4: memref<1x256x1xf32, #tpu.memory_space<vmem>>, %arg5: memref<64x32xbf16, #tpu.memory_space<vmem>>, %arg6: memref<1x256x32xf32, #tpu.memory_space<vmem>>) attributes {dimension_semantics = [#tpu.dimension_semantics<parallel>], iteration_bounds = array<i64: 2>, scalar_prefetch = 0 : i64, scratch_operands = 0 : i64, tpu.core_type = #tpu.core_type<tc>, window_params = [{transform_indices = @transform_0, window_bounds = array<i64: 1, 256, 32>}, {transform_indices = @transform_1, window_bounds = array<i64: 1, 256, 32>}, {transform_indices = @transform_2, window_bounds = array<i64: 1, 256, 32>}, {transform_indices = @transform_3, window_bounds = array<i64: 1, 256, 1>}, {pipeline_mode = #tpu.pipeline_mode<synchronous>, transform_indices = @transform_4, window_bounds = array<i64: 64, 32>}, {transform_indices = @transform_5, window_bounds = array<i64: 1, 256, 32>}]} {
    %c0 = arith.constant 0 : index
    %c0_0 = arith.constant 0 : index
    %c0_1 = arith.constant 0 : index
    %0 = vector.load %arg4[%c0, %c0_0, %c0_1] : memref<1x256x1xf32, #tpu.memory_space<vmem>>, vector<1x256x1xf32>
    %1 = vector.shape_cast %0 : vector<1x256x1xf32> to vector<256x1xf32>
    %c0_2 = arith.constant 0 : index
    %c0_3 = arith.constant 0 : index
    %c0_4 = arith.constant 0 : index
    %2 = vector.load %arg1[%c0_2, %c0_3, %c0_4] : memref<1x256x32xf32, #tpu.memory_space<vmem>>, vector<1x256x32xf32>
    %3 = vector.shape_cast %2 : vector<1x256x32xf32> to vector<256x32xf32>
    %cst = arith.constant 0.176776692 : f32
    %4 = vector.broadcast %cst : f32 to vector<256x32xf32>
    %5 = arith.mulf %3, %4 : vector<256x32xf32>
    %c0_5 = arith.constant 0 : index
    %c0_6 = arith.constant 0 : index
    %c0_7 = arith.constant 0 : index
    %6 = vector.load %arg2[%c0_5, %c0_6, %c0_7] : memref<1x256x32xf32, #tpu.memory_space<vmem>>, vector<1x256x32xf32>
    %7 = vector.shape_cast %6 : vector<1x256x32xf32> to vector<256x32xf32>
    %cst_8 = arith.constant 0.176776692 : f32
    %8 = vector.broadcast %cst_8 : f32 to vector<256x1xf32>
    %9 = arith.mulf %8, %1 : vector<256x1xf32>
    %10 = vector.broadcast %9 : vector<256x1xf32> to vector<256x32xf32>
    %11 = arith.mulf %7, %10 : vector<256x32xf32>
    %c0_9 = arith.constant 0 : index
    %c0_10 = arith.constant 0 : index
    %c0_11 = arith.constant 0 : index
    %12 = vector.load %arg3[%c0_9, %c0_10, %c0_11] : memref<1x256x32xf32, #tpu.memory_space<vmem>>, vector<1x256x32xf32>
    %13 = vector.shape_cast %12 : vector<1x256x32xf32> to vector<256x32xf32>
    %14 = vector.broadcast %1 : vector<256x1xf32> to vector<256x32xf32>
    %15 = arith.mulf %13, %14 : vector<256x32xf32>
    %16 = arith.mulf %5, %5 : vector<256x32xf32>
    %cst_12 = arith.constant dense<0.000000e+00> : vector<256xf32>
    %17 = vector.multi_reduction <add>, %16, %cst_12 [1] : vector<256x32xf32> to vector<256xf32>
    %18 = vector.shape_cast %17 : vector<256xf32> to vector<256x1xf32>
    %cst_13 = arith.constant 5.000000e-01 : f32
    %19 = vector.broadcast %cst_13 : f32 to vector<256x1xf32>
    %20 = arith.mulf %19, %18 : vector<256x1xf32>
    %21 = arith.mulf %11, %11 : vector<256x32xf32>
    %cst_14 = arith.constant dense<0.000000e+00> : vector<256xf32>
    %22 = vector.multi_reduction <add>, %21, %cst_14 [1] : vector<256x32xf32> to vector<256xf32>
    %23 = vector.shape_cast %22 : vector<256xf32> to vector<256x1xf32>
    %cst_15 = arith.constant 5.000000e-01 : f32
    %24 = vector.broadcast %cst_15 : f32 to vector<256x1xf32>
    %25 = arith.mulf %24, %23 : vector<256x1xf32>
    %c0_16 = arith.constant 0 : index
    %c0_17 = arith.constant 0 : index
    %26 = vector.load %arg5[%c0_16, %c0_17] : memref<64x32xbf16, #tpu.memory_space<vmem>>, vector<64x32xbf16>
    %27 = arith.truncf %5 : vector<256x32xf32> to vector<256x32xbf16>
    %cst_18 = arith.constant dense<0.000000e+00> : vector<256x64xf32>
    %28 = tpu.matmul %27, %26, %cst_18 {dimension_numbers = #tpu.dot_dimension_numbers<[1], [1], [0], [0], [0, 0, 1, 0], [], []>} : vector<256x32xbf16>, vector<64x32xbf16>, vector<256x64xf32> -> vector<256x64xf32>
    %29 = arith.truncf %11 : vector<256x32xf32> to vector<256x32xbf16>
    %cst_19 = arith.constant dense<0.000000e+00> : vector<256x64xf32>
    %30 = tpu.matmul %29, %26, %cst_19 {dimension_numbers = #tpu.dot_dimension_numbers<[1], [1], [0], [0], [0, 0, 1, 0], [], []>} : vector<256x32xbf16>, vector<64x32xbf16>, vector<256x64xf32> -> vector<256x64xf32>
    %cst_20 = arith.constant dense<0xFF800000> : vector<256xf32>
    %31 = vector.multi_reduction <maximumf>, %28, %cst_20 [1] : vector<256x64xf32> to vector<256xf32>
    %32 = vector.shape_cast %31 : vector<256xf32> to vector<256x1xf32>
    %33 = vector.broadcast %20 : vector<256x1xf32> to vector<256x64xf32>
    %34 = arith.subf %28, %33 : vector<256x64xf32>
    %35 = vector.broadcast %32 : vector<256x1xf32> to vector<256x64xf32>
    %36 = arith.subf %34, %35 : vector<256x64xf32>
    %37 = math.exp %36 : vector<256x64xf32>
    %cst_21 = arith.constant 9.99999974E-5 : f32
    %38 = vector.broadcast %cst_21 : f32 to vector<256x64xf32>
    %39 = arith.addf %37, %38 : vector<256x64xf32>
    %cst_22 = arith.constant 1.250000e-01 : f32
    %40 = vector.broadcast %cst_22 : f32 to vector<256x64xf32>
    %41 = arith.mulf %40, %39 : vector<256x64xf32>
    %42 = vector.shape_cast %30 : vector<256x64xf32> to vector<2x128x64xf32>
    %cst_23 = arith.constant dense<0xFF800000> : vector<2x128xf32>
    %43 = vector.multi_reduction <maximumf>, %42, %cst_23 [2] : vector<2x128x64xf32> to vector<2x128xf32>
    %44 = vector.shape_cast %43 : vector<2x128xf32> to vector<2x128x1xf32>
    %cst_24 = arith.constant dense<0xFF800000> : vector<2x1xf32>
    %45 = vector.multi_reduction <maximumf>, %44, %cst_24 [1] : vector<2x128x1xf32> to vector<2x1xf32>
    %46 = vector.shape_cast %45 : vector<2x1xf32> to vector<2x1x1xf32>
    %47 = vector.shape_cast %46 : vector<2x1x1xf32> to vector<2x1x1xf32>
    %48 = vector.broadcast %47 : vector<2x1x1xf32> to vector<2x128x1xf32>
    %49 = vector.shape_cast %48 : vector<2x128x1xf32> to vector<256x1xf32>
    %50 = vector.broadcast %25 : vector<256x1xf32> to vector<256x64xf32>
    %51 = arith.subf %30, %50 : vector<256x64xf32>
    %52 = vector.broadcast %49 : vector<256x1xf32> to vector<256x64xf32>
    %53 = arith.subf %51, %52 : vector<256x64xf32>
    %54 = math.exp %53 : vector<256x64xf32>
    %cst_25 = arith.constant 9.99999974E-5 : f32
    %55 = vector.broadcast %cst_25 : f32 to vector<256x64xf32>
    %56 = arith.addf %54, %55 : vector<256x64xf32>
    %cst_26 = arith.constant 1.250000e-01 : f32
    %57 = vector.broadcast %cst_26 : f32 to vector<256x64xf32>
    %58 = arith.mulf %57, %56 : vector<256x64xf32>
    %59 = arith.truncf %41 : vector<256x64xf32> to vector<256x64xbf16>
    %60 = arith.truncf %58 : vector<256x64xf32> to vector<256x64xbf16>
    %61 = arith.truncf %15 : vector<256x32xf32> to vector<256x32xbf16>
    %cst_27 = arith.constant 1.000000e+00 : bf16
    %62 = vector.broadcast %cst_27 : bf16 to vector<256x1xbf16>
    %63 = tpu.concatenate %61, %62 in 1 : vector<256x32xbf16>, vector<256x1xbf16> -> vector<256x33xbf16>
    %64 = vector.extract_strided_slice %59 {offsets = [0, 0], sizes = [128, 64], strides = [1, 1]} : vector<256x64xbf16> to vector<128x64xbf16>
    %65 = vector.extract_strided_slice %60 {offsets = [0, 0], sizes = [128, 64], strides = [1, 1]} : vector<256x64xbf16> to vector<128x64xbf16>
    %66 = vector.extract_strided_slice %63 {offsets = [0, 0], sizes = [128, 33], strides = [1, 1]} : vector<256x33xbf16> to vector<128x33xbf16>
    %cst_28 = arith.constant dense<0.000000e+00> : vector<64x33xf32>
    %67 = tpu.matmul %65, %66, %cst_28 {dimension_numbers = #tpu.dot_dimension_numbers<[0], [0], [1], [1], [0, 1, 1, 1], [], []>} : vector<128x64xbf16>, vector<128x33xbf16>, vector<64x33xf32> -> vector<64x33xf32>
    %68 = arith.truncf %67 : vector<64x33xf32> to vector<64x33xbf16>
    %cst_29 = arith.constant dense<0.000000e+00> : vector<128x33xf32>
    %69 = tpu.matmul %64, %68, %cst_29 {dimension_numbers = #tpu.dot_dimension_numbers<[1], [0], [0], [1], [0, 0, 1, 1], [], []>} : vector<128x64xbf16>, vector<64x33xbf16>, vector<128x33xf32> -> vector<128x33xf32>
    %70 = vector.extract_strided_slice %69 {offsets = [0, 0], sizes = [128, 32], strides = [1, 1]} : vector<128x33xf32> to vector<128x32xf32>
    %71 = vector.extract_strided_slice %69 {offsets = [0, 32], sizes = [128, 1], strides = [1, 1]} : vector<128x33xf32> to vector<128x1xf32>
    %72 = tpu.reciprocal %71 {approx = true} : vector<128x1xf32> -> vector<128x1xf32>
    %73 = vector.broadcast %72 : vector<128x1xf32> to vector<128x32xf32>
    %74 = arith.mulf %70, %73 : vector<128x32xf32>
    %c0_30 = arith.constant 0 : index
    %c0_31 = arith.constant 0 : index
    %c0_32 = arith.constant 0 : index
    %75 = vector.load %arg6[%c0_30, %c0_31, %c0_32] : memref<1x256x32xf32, #tpu.memory_space<vmem>>, vector<1x128x32xf32>
    %76 = vector.shape_cast %75 : vector<1x128x32xf32> to vector<128x32xf32>
    %77 = vector.shape_cast %74 : vector<128x32xf32> to vector<1x128x32xf32>
    tpu.vector_store %arg6[%c0_30, %c0_31, %c0_32], %77 {strides = array<i32>} : memref<1x256x32xf32, #tpu.memory_space<vmem>>, vector<1x128x32xf32>,
    %78 = vector.extract_strided_slice %59 {offsets = [128, 0], sizes = [128, 64], strides = [1, 1]} : vector<256x64xbf16> to vector<128x64xbf16>
    %79 = vector.extract_strided_slice %60 {offsets = [128, 0], sizes = [128, 64], strides = [1, 1]} : vector<256x64xbf16> to vector<128x64xbf16>
    %80 = vector.extract_strided_slice %63 {offsets = [128, 0], sizes = [128, 33], strides = [1, 1]} : vector<256x33xbf16> to vector<128x33xbf16>
    %cst_33 = arith.constant dense<0.000000e+00> : vector<64x33xf32>
    %81 = tpu.matmul %79, %80, %cst_33 {dimension_numbers = #tpu.dot_dimension_numbers<[0], [0], [1], [1], [0, 1, 1, 1], [], []>} : vector<128x64xbf16>, vector<128x33xbf16>, vector<64x33xf32> -> vector<64x33xf32>
    %82 = arith.truncf %81 : vector<64x33xf32> to vector<64x33xbf16>
    %cst_34 = arith.constant dense<0.000000e+00> : vector<128x33xf32>
    %83 = tpu.matmul %78, %82, %cst_34 {dimension_numbers = #tpu.dot_dimension_numbers<[1], [0], [0], [1], [0, 0, 1, 1], [], []>} : vector<128x64xbf16>, vector<64x33xbf16>, vector<128x33xf32> -> vector<128x33xf32>
    %84 = vector.extract_strided_slice %83 {offsets = [0, 0], sizes = [128, 32], strides = [1, 1]} : vector<128x33xf32> to vector<128x32xf32>
    %85 = vector.extract_strided_slice %83 {offsets = [0, 32], sizes = [128, 1], strides = [1, 1]} : vector<128x33xf32> to vector<128x1xf32>
    %86 = tpu.reciprocal %85 {approx = true} : vector<128x1xf32> -> vector<128x1xf32>
    %87 = vector.broadcast %86 : vector<128x1xf32> to vector<128x32xf32>
    %88 = arith.mulf %84, %87 : vector<128x32xf32>
    %c0_35 = arith.constant 0 : index
    %c128 = arith.constant 128 : index
    %c0_36 = arith.constant 0 : index
    %89 = vector.load %arg6[%c0_35, %c128, %c0_36] : memref<1x256x32xf32, #tpu.memory_space<vmem>>, vector<1x128x32xf32>
    %90 = vector.shape_cast %89 : vector<1x128x32xf32> to vector<128x32xf32>
    %91 = vector.shape_cast %88 : vector<128x32xf32> to vector<1x128x32xf32>
    tpu.vector_store %arg6[%c0_35, %c128, %c0_36], %91 {strides = array<i32>} : memref<1x256x32xf32, #tpu.memory_space<vmem>>, vector<1x128x32xf32>,
    return
  }
  func.func @transform_0(%arg0: i32) -> (i32, i32, i32) {
    %c0_i32 = arith.constant 0 : i32
    %c0_i32_0 = arith.constant 0 : i32
    %c0_i32_1 = arith.constant 0 : i32
    return %arg0, %c0_i32, %c0_i32_0 : i32, i32, i32
  }
  func.func @transform_1(%arg0: i32) -> (i32, i32, i32) {
    %c0_i32 = arith.constant 0 : i32
    %c0_i32_0 = arith.constant 0 : i32
    %c0_i32_1 = arith.constant 0 : i32
    return %arg0, %c0_i32, %c0_i32_0 : i32, i32, i32
  }
  func.func @transform_2(%arg0: i32) -> (i32, i32, i32) {
    %c0_i32 = arith.constant 0 : i32
    %c0_i32_0 = arith.constant 0 : i32
    %c0_i32_1 = arith.constant 0 : i32
    return %arg0, %c0_i32, %c0_i32_0 : i32, i32, i32
  }
  func.func @transform_3(%arg0: i32) -> (i32, i32, i32) {
    %c0_i32 = arith.constant 0 : i32
    %c0_i32_0 = arith.constant 0 : i32
    %c0_i32_1 = arith.constant 0 : i32
    return %arg0, %c0_i32, %c0_i32_0 : i32, i32, i32
  }
  func.func @transform_4(%arg0: i32) -> (i32, i32) {
    %c0_i32 = arith.constant 0 : i32
    %c0_i32_0 = arith.constant 0 : i32
    %c0_i32_1 = arith.constant 0 : i32
    return %c0_i32, %c0_i32_0 : i32, i32
  }
  func.func @transform_5(%arg0: i32) -> (i32, i32, i32) {
    %c0_i32 = arith.constant 0 : i32
    %c0_i32_0 = arith.constant 0 : i32
    %c0_i32_1 = arith.constant 0 : i32
    return %arg0, %c0_i32, %c0_i32_0 : i32, i32, i32
  }
}

</mosaic_0001>

<llo_original>
// kernel: tpu_custom_call.1
$region0: #{tpu_custom_call.1}
  #allocation0 [shape = 'u32[]', space=smem, size = 0x4, offset = 0x4, fixed_abs, tag = 'smem constant byte address 0x4 - core index']
  #allocation1 [shape = 'u32[144,128]{1,0:T(1,128)}', space=vmem, size = 0x12000, scoped, tag = 'internal scratch']
  %s0 = inlined_call_operand.vmem [shape: f32[2,256,32], index: 0, kind: input, shape index: {}]
  %s1 = inlined_call_operand.vmem [shape: f32[2,256,32], index: 1, kind: input, shape index: {}]
  %s2 = inlined_call_operand.vmem [shape: f32[2,256,32], index: 2, kind: input, shape index: {}]
  %s3 = inlined_call_operand.vmem [shape: f32[2,256,1], index: 3, kind: input, shape index: {}]
  %s4 = inlined_call_operand.vmem [shape: bf16[64,32], index: 4, kind: input, shape index: {}]
  %s5 = inlined_call_operand.vmem [shape: f32[2,256,32], index: 5, kind: output, shape index: {}]
  %s6 = sld [smem:[#allocation0]]
  $region53: #{tpu_custom_call.1} parent=0
    _
  %s8 = ssub.s32 1, %s6
  %s9 = scalar_select 0, %s8, %s6
  loop: start=0, step=1, limit=4
  $region2: #{tpu_custom_call.1} parent=0 // loop_pre_header
    _
  $region3: #{tpu_custom_call.1} parent=0 // loop_header
    %s11 = sphi 0, %s15
    %p12 = scmp.ge.s32.totalorder %s11, 4
    %s21 = sphi 0, %s23
    %s24 = sphi 0, %s21
    %s25 = sphi 0, %s24
    %s41 = sphi 0, %s25
    %s47 = sphi 0, %s49
    %s50 = sphi 0, %s47
    %s51 = sphi 0, %s50
    %s67 = sphi 0, %s51
    %s73 = sphi 0, %s75
    %s76 = sphi 0, %s73
    %s77 = sphi 0, %s76
    %s93 = sphi 0, %s77
    %s99 = sphi 0, %s101
    %s102 = sphi 0, %s99
    %s103 = sphi 0, %s102
    %s119 = sphi 0, %s103
    %s123 = sphi 0, %s123
    %s125 = sphi 0, %s123
    %s126 = sphi 0, %s125
    %s140 = sphi 0, %s126
    %s146 = sphi 0, %s148
    %s149 = sphi 0, %s146
    %s150 = sphi 0, %s149
    %s166 = sphi 0, %s150
  $region4: #{tpu_custom_call.1} parent=0 // loop_header_branch
    %14 = sbr.rel (%p12) target = $region8
  $region5: #{tpu_custom_call.1} parent=0 // loop_body
    %s16 = ssub.s32 %s11, 1
    %s17 = ssub.s32 %s11, 2
    %s18 = sadd.s32 %s11, 1
    %s19 = ssub.s32 %s11, %s18
    %p20 = scmp.eq.s32.totalorder %s19, 0
    %s22 = sadd.s32 %s21, 1
    %s23 = scalar_select %p20, %s21, %s22
    %p26 = pneg %p20
    %p27 = scmp.eq.s32.totalorder %s11, 1
    %p28 = por %p26, %p27
    %p29 = scmp.ne.s32.totalorder %s21, %s24
    %p30 = scmp.eq.s32.totalorder %s11, 0
    %p31 = por %p29, %p30
    %p32 = scmp.ne.s32.totalorder %s21, %s24
    %p33 = scmp.eq.s32.totalorder %s16, 1
    %p34 = por %p32, %p33
    %p35 = scmp.ne.s32.totalorder %s24, %s25
    %p36 = scmp.eq.s32.totalorder %s16, 0
    %p37 = por %p35, %p36
    %p38 = scmp.ne.s32.totalorder %s24, %s25
    %p39 = scmp.eq.s32.totalorder %s17, 1
    %p40 = por %p38, %p39
    %p42 = scmp.ne.s32.totalorder %s25, %s41
    %p43 = scmp.eq.s32.totalorder %s17, 0
    %p44 = por %p42, %p43
    %s45 = ssub.s32 %s11, %s18
    %p46 = scmp.eq.s32.totalorder %s45, 0
    %s48 = sadd.s32 %s47, 1
    %s49 = scalar_select %p46, %s47, %s48
    %p52 = pneg %p46
    %p53 = scmp.eq.s32.totalorder %s11, 1
    %p54 = por %p52, %p53
    %p55 = scmp.ne.s32.totalorder %s47, %s50
    %p56 = scmp.eq.s32.totalorder %s11, 0
    %p57 = por %p55, %p56
    %p58 = scmp.ne.s32.totalorder %s47, %s50
    %p59 = scmp.eq.s32.totalorder %s16, 1
    %p60 = por %p58, %p59
    %p61 = scmp.ne.s32.totalorder %s50, %s51
    %p62 = scmp.eq.s32.totalorder %s16, 0
    %p63 = por %p61, %p62
    %p64 = scmp.ne.s32.totalorder %s50, %s51
    %p65 = scmp.eq.s32.totalorder %s17, 1
    %p66 = por %p64, %p65
    %p68 = scmp.ne.s32.totalorder %s51, %s67
    %p69 = scmp.eq.s32.totalorder %s17, 0
    %p70 = por %p68, %p69
    %s71 = ssub.s32 %s11, %s18
    %p72 = scmp.eq.s32.totalorder %s71, 0
    %s74 = sadd.s32 %s73, 1
    %s75 = scalar_select %p72, %s73, %s74
    %p78 = pneg %p72
    %p79 = scmp.eq.s32.totalorder %s11, 1
    %p80 = por %p78, %p79
    %p81 = scmp.ne.s32.totalorder %s73, %s76
    %p82 = scmp.eq.s32.totalorder %s11, 0
    %p83 = por %p81, %p82
    %p84 = scmp.ne.s32.totalorder %s73, %s76
    %p85 = scmp.eq.s32.totalorder %s16, 1
    %p86 = por %p84, %p85
    %p87 = scmp.ne.s32.totalorder %s76, %s77
    %p88 = scmp.eq.s32.totalorder %s16, 0
    %p89 = por %p87, %p88
    %p90 = scmp.ne.s32.totalorder %s76, %s77
    %p91 = scmp.eq.s32.totalorder %s17, 1
    %p92 = por %p90, %p91
    %p94 = scmp.ne.s32.totalorder %s77, %s93
    %p95 = scmp.eq.s32.totalorder %s17, 0
    %p96 = por %p94, %p95
    %s97 = ssub.s32 %s11, %s18
    %p98 = scmp.eq.s32.totalorder %s97, 0
    %s100 = sadd.s32 %s99, 1
    %s101 = scalar_select %p98, %s99, %s100
    %p104 = pneg %p98
    %p105 = scmp.eq.s32.totalorder %s11, 1
    %p106 = por %p104, %p105
    %p107 = scmp.ne.s32.totalorder %s99, %s102
    %p108 = scmp.eq.s32.totalorder %s11, 0
    %p109 = por %p107, %p108
    %p110 = scmp.ne.s32.totalorder %s99, %s102
    %p111 = scmp.eq.s32.totalorder %s16, 1
    %p112 = por %p110, %p111
    %p113 = scmp.ne.s32.totalorder %s102, %s103
    %p114 = scmp.eq.s32.totalorder %s16, 0
    %p115 = por %p113, %p114
    %p116 = scmp.ne.s32.totalorder %s102, %s103
    %p117 = scmp.eq.s32.totalorder %s17, 1
    %p118 = por %p116, %p117
    %p120 = scmp.ne.s32.totalorder %s103, %s119
    %p121 = scmp.eq.s32.totalorder %s17, 0
    %p122 = por %p120, %p121
    %s124 = sadd.s32 %s123, 1
    %p127 = scmp.eq.s32.totalorder %s11, 1
    %p128 = scmp.ne.s32.totalorder %s123, %s125
    %p129 = scmp.eq.s32.totalorder %s11, 0
    %p130 = por %p128, %p129
    %p131 = scmp.ne.s32.totalorder %s123, %s125
    %p132 = scmp.eq.s32.totalorder %s16, 1
    %p133 = por %p131, %p132
    %p134 = scmp.ne.s32.totalorder %s125, %s126
    %p135 = scmp.eq.s32.totalorder %s16, 0
    %p136 = por %p134, %p135
    %p137 = scmp.ne.s32.totalorder %s125, %s126
    %p138 = scmp.eq.s32.totalorder %s17, 1
    %p139 = por %p137, %p138
    %p141 = scmp.ne.s32.totalorder %s126, %s140
    %p142 = scmp.eq.s32.totalorder %s17, 0
    %p143 = por %p141, %p142
    %s144 = ssub.s32 %s11, %s18
    %p145 = scmp.eq.s32.totalorder %s144, 0
    %s147 = sadd.s32 %s146, 1
    %s148 = scalar_select %p145, %s146, %s147
    %p151 = pneg %p145
    %p152 = scmp.eq.s32.totalorder %s11, 1
    %p153 = por %p151, %p152
    %p154 = scmp.ne.s32.totalorder %s146, %s149
    %p155 = scmp.eq.s32.totalorder %s11, 0
    %p156 = por %p154, %p155
    %p157 = scmp.ne.s32.totalorder %s146, %s149
    %p158 = scmp.eq.s32.totalorder %s16, 1
    %p159 = por %p157, %p158
    %p160 = scmp.ne.s32.totalorder %s149, %s150
    %p161 = scmp.eq.s32.totalorder %s16, 0
    %p162 = por %p160, %p161
    %p163 = scmp.ne.s32.totalorder %s149, %s150
    %p164 = scmp.eq.s32.totalorder %s17, 1
    %p165 = por %p163, %p164
    %p167 = scmp.ne.s32.totalorder %s150, %s166
    %p168 = scmp.eq.s32.totalorder %s17, 0
    %p169 = por %p167, %p168
    %p170 = scmp.le.s32.totalorder 1, %s11
    %p171 = scmp.lt.s32.totalorder %s11, 3
    %p172 = pnand %p170, %p171
    %p173 = pneg %p172
    // Predicated region
    $region9: #{tpu_custom_call.1} parent=5 // pred_check
      _
    $region10: #{tpu_custom_call.1} parent=5 // pred_check_branch
      %175 = sbr.rel (%p172) target = $region12
    $region11: #{tpu_custom_call.1} parent=5 // pred_region
      %s176 = ssub.s32 %s11, 1
      // Predicated region
      $region13: #{tpu_custom_call.1} parent=11 // pred_check
        %p177 = pneg %p136
      $region14: #{tpu_custom_call.1} parent=11 // pred_check_branch
        %179 = sbr.rel (%p177) target = $region16
      $region15: #{tpu_custom_call.1} parent=11 // pred_region
        _
      $region16: #{tpu_custom_call.1} parent=11 // pred_fallthru
        _
    $region12: #{tpu_custom_call.1} parent=5 // pred_fallthru
      _
    %p180 = scmp.lt.s32.totalorder %s11, 2
    // Predicated region
    $region17: #{tpu_custom_call.1} parent=5 // pred_check
      %p181 = pneg %p180
    $region18: #{tpu_custom_call.1} parent=5 // pred_check_branch
      %183 = sbr.rel (%p181) target = $region20
    $region19: #{tpu_custom_call.1} parent=5 // pred_region
      // Predicated region
      $region21: #{tpu_custom_call.1} parent=19 // pred_check
        %p184 = pneg %p31
      $region22: #{tpu_custom_call.1} parent=19 // pred_check_branch
        %186 = sbr.rel (%p184) target = $region24
      $region23: #{tpu_custom_call.1} parent=19 // pred_region
        %p187 = scmp.lt.s32.totalorder %s11, 1
        %s188 = scalar_select %p187, %s11, 1
        %s189 = smul.addr %s188, 32
        %s190 = smul.addr %s189, 8
        %s191 = scalar_lea.vmem %s0, %s190
      $region24: #{tpu_custom_call.1} parent=19 // pred_fallthru
        _
      // Predicated region
      $region25: #{tpu_custom_call.1} parent=19 // pred_check
        %p192 = pneg %p57
      $region26: #{tpu_custom_call.1} parent=19 // pred_check_branch
        %194 = sbr.rel (%p192) target = $region28
      $region27: #{tpu_custom_call.1} parent=19 // pred_region
        %p195 = scmp.lt.s32.totalorder %s11, 1
        %s196 = scalar_select %p195, %s11, 1
        %s197 = smul.addr %s196, 32
        %s198 = smul.addr %s197, 8
        %s199 = scalar_lea.vmem %s1, %s198
      $region28: #{tpu_custom_call.1} parent=19 // pred_fallthru
        _
      // Predicated region
      $region29: #{tpu_custom_call.1} parent=19 // pred_check
        %p200 = pneg %p83
      $region30: #{tpu_custom_call.1} parent=19 // pred_check_branch
        %202 = sbr.rel (%p200) target = $region32
      $region31: #{tpu_custom_call.1} parent=19 // pred_region
        %p203 = scmp.lt.s32.totalorder %s11, 1
        %s204 = scalar_select %p203, %s11, 1
        %s205 = smul.addr %s204, 32
        %s206 = smul.addr %s205, 8
        %s207 = scalar_lea.vmem %s2, %s206
      $region32: #{tpu_custom_call.1} parent=19 // pred_fallthru
        _
      // Predicated region
      $region33: #{tpu_custom_call.1} parent=19 // pred_check
        %p208 = pneg %p109
      $region34: #{tpu_custom_call.1} parent=19 // pred_check_branch
        %210 = sbr.rel (%p208) target = $region36
      $region35: #{tpu_custom_call.1} parent=19 // pred_region
        %p211 = scmp.lt.s32.totalorder %s11, 1
        %s212 = scalar_select %p211, %s11, 1
        %s213 = smul.addr %s212, 32
        %s214 = smul.addr %s213, 8
        %s215 = scalar_lea.vmem %s3, %s214
      $region36: #{tpu_custom_call.1} parent=19 // pred_fallthru
        _
    $region20: #{tpu_custom_call.1} parent=5 // pred_fallthru
      _
    %p216 = scmp.le.s32.totalorder 1, %s11
    %p217 = scmp.lt.s32.totalorder %s11, 3
    %p218 = pnand %p216, %p217
    %p219 = pneg %p218
    // Predicated region
    $region37: #{tpu_custom_call.1} parent=5 // pred_check
      _
    $region38: #{tpu_custom_call.1} parent=5 // pred_check_branch
      %221 = sbr.rel (%p218) target = $region40
    $region39: #{tpu_custom_call.1} parent=5 // pred_region
      %s222 = ssub.s32 %s11, 1
      %p223 = scmp.lt.s32.totalorder %s16, 1
      %s224 = scalar_select %p223, %s16, 1
      %s225 = smul.addr %s224, 32
      %s226 = smul.addr %s225, 8
      %s227 = scalar_lea.vmem %s0, %s226
      %p228 = pneg %p37
      %p229 = pneg %p34
      %p230 = scmp.lt.s32.totalorder %s16, 1
      %s231 = scalar_select %p230, %s16, 1
      %s232 = smul.addr %s231, 32
      %s233 = smul.addr %s232, 8
      %s234 = scalar_lea.vmem %s1, %s233
      %p235 = pneg %p63
      %p236 = pneg %p60
      %p237 = scmp.lt.s32.totalorder %s16, 1
      %s238 = scalar_select %p237, %s16, 1
      %s239 = smul.addr %s238, 32
      %s240 = smul.addr %s239, 8
      %s241 = scalar_lea.vmem %s2, %s240
      %p242 = pneg %p89
      %p243 = pneg %p86
      %p244 = scmp.lt.s32.totalorder %s16, 1
      %s245 = scalar_select %p244, %s16, 1
      %s246 = smul.addr %s245, 32
      %s247 = smul.addr %s246, 8
      %s248 = scalar_lea.vmem %s3, %s247
      %p249 = pneg %p115
      %p250 = pneg %p112
      %p251 = pneg %p136
      %p252 = pneg %p133
      %p253 = pneg %p162
      %p254 = pneg %p159
      %p255 = scmp.lt.s32.totalorder %s16, 1
      %s256 = scalar_select %p255, %s16, 1
      %s257 = smul.addr %s256, 32
      %s258 = smul.addr %s257, 8
      %s259 = scalar_lea.vmem %s5, %s258
      %p260 = scmp.lt.s32.totalorder %s16, 1
      %s261 = scalar_select %p260, %s16, 1
      %s262 = smul.addr %s261, 32
      %s263 = smul.addr %s262, 8
      %s264 = scalar_lea.vmem %s0, %s263
      %p265 = scmp.lt.s32.totalorder %s16, 1
      %s266 = scalar_select %p265, %s16, 1
      %s267 = smul.addr %s266, 32
      %s268 = smul.addr %s267, 8
      %s269 = scalar_lea.vmem %s1, %s268
      %p270 = scmp.lt.s32.totalorder %s16, 1
      %s271 = scalar_select %p270, %s16, 1
      %s272 = smul.addr %s271, 32
      %s273 = smul.addr %s272, 8
      %s274 = scalar_lea.vmem %s2, %s273
      %p275 = scmp.lt.s32.totalorder %s16, 1
      %s276 = scalar_select %p275, %s16, 1
      %s277 = smul.addr %s276, 32
      %s278 = smul.addr %s277, 8
      %s279 = scalar_lea.vmem %s3, %s278
      %p280 = scmp.lt.s32.totalorder %s16, 1
      %s281 = scalar_select %p280, %s16, 1
      %s282 = smul.addr %s281, 32
      %s283 = smul.addr %s282, 8
      %s284 = scalar_lea.vmem %s5, %s283
      %v287 = vld [vmem:[%s279] sm:$0xff]
      %v288 = vld [vmem:[%s279 + $0x8] sm:$0xff]
      %v289 = vld [vmem:[%s279 + $0x10] sm:$0xff]
      %v290 = vld [vmem:[%s279 + $0x18] sm:$0xff]
      %v291 = vld [vmem:[%s279 + $0x20] sm:$0xff]
      %v292 = vld [vmem:[%s279 + $0x28] sm:$0xff]
      %v293 = vld [vmem:[%s279 + $0x30] sm:$0xff]
      %v294 = vld [vmem:[%s279 + $0x38] sm:$0xff]
      %v295 = vld [vmem:[%s279 + $0x40] sm:$0xff]
      %v296 = vld [vmem:[%s279 + $0x48] sm:$0xff]
      %v297 = vld [vmem:[%s279 + $0x50] sm:$0xff]
      %v298 = vld [vmem:[%s279 + $0x58] sm:$0xff]
      %v299 = vld [vmem:[%s279 + $0x60] sm:$0xff]
      %v300 = vld [vmem:[%s279 + $0x68] sm:$0xff]
      %v301 = vld [vmem:[%s279 + $0x70] sm:$0xff]
      %v302 = vld [vmem:[%s279 + $0x78] sm:$0xff]
      %v303 = vld [vmem:[%s279 + $0x80] sm:$0xff]
      %v304 = vld [vmem:[%s279 + $0x88] sm:$0xff]
      %v305 = vld [vmem:[%s279 + $0x90] sm:$0xff]
      %v306 = vld [vmem:[%s279 + $0x98] sm:$0xff]
      %v307 = vld [vmem:[%s279 + $0xa0] sm:$0xff]
      %v308 = vld [vmem:[%s279 + $0xa8] sm:$0xff]
      %v309 = vld [vmem:[%s279 + $0xb0] sm:$0xff]
      %v310 = vld [vmem:[%s279 + $0xb8] sm:$0xff]
      %v311 = vld [vmem:[%s279 + $0xc0] sm:$0xff]
      %v312 = vld [vmem:[%s279 + $0xc8] sm:$0xff]
      %v313 = vld [vmem:[%s279 + $0xd0] sm:$0xff]
      %v314 = vld [vmem:[%s279 + $0xd8] sm:$0xff]
      %v315 = vld [vmem:[%s279 + $0xe0] sm:$0xff]
      %v316 = vld [vmem:[%s279 + $0xe8] sm:$0xff]
      %v317 = vld [vmem:[%s279 + $0xf0] sm:$0xff]
      %v318 = vld [vmem:[%s279 + $0xf8] sm:$0xff]
      %v319 = vld [vmem:[%s264] sm:$0xff]
      %v320 = vld [vmem:[%s264 + $0x8] sm:$0xff]
      %v321 = vld [vmem:[%s264 + $0x10] sm:$0xff]
      %v322 = vld [vmem:[%s264 + $0x18] sm:$0xff]
      %v323 = vld [vmem:[%s264 + $0x20] sm:$0xff]
      %v324 = vld [vmem:[%s264 + $0x28] sm:$0xff]
      %v325 = vld [vmem:[%s264 + $0x30] sm:$0xff]
      %v326 = vld [vmem:[%s264 + $0x38] sm:$0xff]
      %v327 = vld [vmem:[%s264 + $0x40] sm:$0xff]
      %v328 = vld [vmem:[%s264 + $0x48] sm:$0xff]
      %v329 = vld [vmem:[%s264 + $0x50] sm:$0xff]
      %v330 = vld [vmem:[%s264 + $0x58] sm:$0xff]
      %v331 = vld [vmem:[%s264 + $0x60] sm:$0xff]
      %v332 = vld [vmem:[%s264 + $0x68] sm:$0xff]
      %v333 = vld [vmem:[%s264 + $0x70] sm:$0xff]
      %v334 = vld [vmem:[%s264 + $0x78] sm:$0xff]
      %v335 = vld [vmem:[%s264 + $0x80] sm:$0xff]
      %v336 = vld [vmem:[%s264 + $0x88] sm:$0xff]
      %v337 = vld [vmem:[%s264 + $0x90] sm:$0xff]
      %v338 = vld [vmem:[%s264 + $0x98] sm:$0xff]
      %v339 = vld [vmem:[%s264 + $0xa0] sm:$0xff]
      %v340 = vld [vmem:[%s264 + $0xa8] sm:$0xff]
      %v341 = vld [vmem:[%s264 + $0xb0] sm:$0xff]
      %v342 = vld [vmem:[%s264 + $0xb8] sm:$0xff]
      %v343 = vld [vmem:[%s264 + $0xc0] sm:$0xff]
      %v344 = vld [vmem:[%s264 + $0xc8] sm:$0xff]
      %v345 = vld [vmem:[%s264 + $0xd0] sm:$0xff]
      %v346 = vld [vmem:[%s264 + $0xd8] sm:$0xff]
      %v347 = vld [vmem:[%s264 + $0xe0] sm:$0xff]
      %v348 = vld [vmem:[%s264 + $0xe8] sm:$0xff]
      %v349 = vld [vmem:[%s264 + $0xf0] sm:$0xff]
      %v350 = vld [vmem:[%s264 + $0xf8] sm:$0xff]
      %v351 = vmul.f32 %v319, 0.17677669
      %v352 = vmul.f32 %v320, 0.17677669
      %v353 = vmul.f32 %v321, 0.17677669
      %v354 = vmul.f32 %v322, 0.17677669
      %v355 = vmul.f32 %v323, 0.17677669
      %v356 = vmul.f32 %v324, 0.17677669
      %v357 = vmul.f32 %v325, 0.17677669
      %v358 = vmul.f32 %v326, 0.17677669
      %v359 = vmul.f32 %v327, 0.17677669
      %v360 = vmul.f32 %v328, 0.17677669
      %v361 = vmul.f32 %v329, 0.17677669
      %v362 = vmul.f32 %v330, 0.17677669
      %v363 = vmul.f32 %v331, 0.17677669
      %v364 = vmul.f32 %v332, 0.17677669
      %v365 = vmul.f32 %v333, 0.17677669
      %v366 = vmul.f32 %v334, 0.17677669
      %v367 = vmul.f32 %v335, 0.17677669
      %v368 = vmul.f32 %v336, 0.17677669
      %v369 = vmul.f32 %v337, 0.17677669
      %v370 = vmul.f32 %v338, 0.17677669
      %v371 = vmul.f32 %v339, 0.17677669
      %v372 = vmul.f32 %v340, 0.17677669
      %v373 = vmul.f32 %v341, 0.17677669
      %v374 = vmul.f32 %v342, 0.17677669
      %v375 = vmul.f32 %v343, 0.17677669
      %v376 = vmul.f32 %v344, 0.17677669
      %v377 = vmul.f32 %v345, 0.17677669
      %v378 = vmul.f32 %v346, 0.17677669
      %v379 = vmul.f32 %v347, 0.17677669
      %v380 = vmul.f32 %v348, 0.17677669
      %v381 = vmul.f32 %v349, 0.17677669
      %v382 = vmul.f32 %v350, 0.17677669
      %v383 = vld [vmem:[%s269] sm:$0xff]
      %v384 = vld [vmem:[%s269 + $0x8] sm:$0xff]
      %v385 = vld [vmem:[%s269 + $0x10] sm:$0xff]
      %v386 = vld [vmem:[%s269 + $0x18] sm:$0xff]
      %v387 = vld [vmem:[%s269 + $0x20] sm:$0xff]
      %v388 = vld [vmem:[%s269 + $0x28] sm:$0xff]
      %v389 = vld [vmem:[%s269 + $0x30] sm:$0xff]
      %v390 = vld [vmem:[%s269 + $0x38] sm:$0xff]
      %v391 = vld [vmem:[%s269 + $0x40] sm:$0xff]
      %v392 = vld [vmem:[%s269 + $0x48] sm:$0xff]
      %v393 = vld [vmem:[%s269 + $0x50] sm:$0xff]
      %v394 = vld [vmem:[%s269 + $0x58] sm:$0xff]
      %v395 = vld [vmem:[%s269 + $0x60] sm:$0xff]
      %v396 = vld [vmem:[%s269 + $0x68] sm:$0xff]
      %v397 = vld [vmem:[%s269 + $0x70] sm:$0xff]
      %v398 = vld [vmem:[%s269 + $0x78] sm:$0xff]
      %v399 = vld [vmem:[%s269 + $0x80] sm:$0xff]
      %v400 = vld [vmem:[%s269 + $0x88] sm:$0xff]
      %v401 = vld [vmem:[%s269 + $0x90] sm:$0xff]
      %v402 = vld [vmem:[%s269 + $0x98] sm:$0xff]
      %v403 = vld [vmem:[%s269 + $0xa0] sm:$0xff]
      %v404 = vld [vmem:[%s269 + $0xa8] sm:$0xff]
      %v405 = vld [vmem:[%s269 + $0xb0] sm:$0xff]
      %v406 = vld [vmem:[%s269 + $0xb8] sm:$0xff]
      %v407 = vld [vmem:[%s269 + $0xc0] sm:$0xff]
      %v408 = vld [vmem:[%s269 + $0xc8] sm:$0xff]
      %v409 = vld [vmem:[%s269 + $0xd0] sm:$0xff]
      %v410 = vld [vmem:[%s269 + $0xd8] sm:$0xff]
      %v411 = vld [vmem:[%s269 + $0xe0] sm:$0xff]
      %v412 = vld [vmem:[%s269 + $0xe8] sm:$0xff]
      %v413 = vld [vmem:[%s269 + $0xf0] sm:$0xff]
      %v414 = vld [vmem:[%s269 + $0xf8] sm:$0xff]
      %v415 = vmul.f32 %v287, 0.17677669
      %v416 = vmul.f32 %v288, 0.17677669
      %v417 = vmul.f32 %v289, 0.17677669
      %v418 = vmul.f32 %v290, 0.17677669
      %v419 = vmul.f32 %v291, 0.17677669
      %v420 = vmul.f32 %v292, 0.17677669
      %v421 = vmul.f32 %v293, 0.17677669
      %v422 = vmul.f32 %v294, 0.17677669
      %v423 = vmul.f32 %v295, 0.17677669
      %v424 = vmul.f32 %v296, 0.17677669
      %v425 = vmul.f32 %v297, 0.17677669
      %v426 = vmul.f32 %v298, 0.17677669
      %v427 = vmul.f32 %v299, 0.17677669
      %v428 = vmul.f32 %v300, 0.17677669
      %v429 = vmul.f32 %v301, 0.17677669
      %v430 = vmul.f32 %v302, 0.17677669
      %v431 = vmul.f32 %v303, 0.17677669
      %v432 = vmul.f32 %v304, 0.17677669
      %v433 = vmul.f32 %v305, 0.17677669
      %v434 = vmul.f32 %v306, 0.17677669
      %v435 = vmul.f32 %v307, 0.17677669
      %v436 = vmul.f32 %v308, 0.17677669
      %v437 = vmul.f32 %v309, 0.17677669
      %v438 = vmul.f32 %v310, 0.17677669
      %v439 = vmul.f32 %v311, 0.17677669
      %v440 = vmul.f32 %v312, 0.17677669
      %v441 = vmul.f32 %v313, 0.17677669
      %v442 = vmul.f32 %v314, 0.17677669
      %v443 = vmul.f32 %v315, 0.17677669
      %v444 = vmul.f32 %v316, 0.17677669
      %v445 = vmul.f32 %v317, 0.17677669
      %v446 = vmul.f32 %v318, 0.17677669
      %448 = vset.pattern.permute.xlu0 0
      %449 = vperm.xlu0 %448, %v415
      %v450 = vpop.permute.xlu0 %449
      %453 = vset.pattern.permute.xlu0 0
      %454 = vperm.xlu0 %453, %v416
      %v455 = vpop.permute.xlu0 %454
      %458 = vset.pattern.permute.xlu0 0
      %459 = vperm.xlu0 %458, %v417
      %v460 = vpop.permute.xlu0 %459
      %463 = vset.pattern.permute.xlu0 0
      %464 = vperm.xlu0 %463, %v418
      %v465 = vpop.permute.xlu0 %464
      %468 = vset.pattern.permute.xlu0 0
      %469 = vperm.xlu0 %468, %v419
      %v470 = vpop.permute.xlu0 %469
      %473 = vset.pattern.permute.xlu0 0
      %474 = vperm.xlu0 %473, %v420
      %v475 = vpop.permute.xlu0 %474
      %478 = vset.pattern.permute.xlu0 0
      %479 = vperm.xlu0 %478, %v421
      %v480 = vpop.permute.xlu0 %479
      %483 = vset.pattern.permute.xlu0 0
      %484 = vperm.xlu0 %483, %v422
      %v485 = vpop.permute.xlu0 %484
      %488 = vset.pattern.permute.xlu0 0
      %489 = vperm.xlu0 %488, %v423
      %v490 = vpop.permute.xlu0 %489
      %493 = vset.pattern.permute.xlu0 0
      %494 = vperm.xlu0 %493, %v424
      %v495 = vpop.permute.xlu0 %494
      %498 = vset.pattern.permute.xlu0 0
      %499 = vperm.xlu0 %498, %v425
      %v500 = vpop.permute.xlu0 %499
      %503 = vset.pattern.permute.xlu0 0
      %504 = vperm.xlu0 %503, %v426
      %v505 = vpop.permute.xlu0 %504
      %508 = vset.pattern.permute.xlu0 0
      %509 = vperm.xlu0 %508, %v427
      %v510 = vpop.permute.xlu0 %509
      %513 = vset.pattern.permute.xlu0 0
      %514 = vperm.xlu0 %513, %v428
      %v515 = vpop.permute.xlu0 %514
      %518 = vset.pattern.permute.xlu0 0
      %519 = vperm.xlu0 %518, %v429
      %v520 = vpop.permute.xlu0 %519
      %523 = vset.pattern.permute.xlu0 0
      %524 = vperm.xlu0 %523, %v430
      %v525 = vpop.permute.xlu0 %524
      %528 = vset.pattern.permute.xlu0 0
      %529 = vperm.xlu0 %528, %v431
      %v530 = vpop.permute.xlu0 %529
      %533 = vset.pattern.permute.xlu0 0
      %534 = vperm.xlu0 %533, %v432
      %v535 = vpop.permute.xlu0 %534
      %538 = vset.pattern.permute.xlu0 0
      %539 = vperm.xlu0 %538, %v433
      %v540 = vpop.permute.xlu0 %539
      %543 = vset.pattern.permute.xlu0 0
      %544 = vperm.xlu0 %543, %v434
      %v545 = vpop.permute.xlu0 %544
      %548 = vset.pattern.permute.xlu0 0
      %549 = vperm.xlu0 %548, %v435
      %v550 = vpop.permute.xlu0 %549
      %553 = vset.pattern.permute.xlu0 0
      %554 = vperm.xlu0 %553, %v436
      %v555 = vpop.permute.xlu0 %554
      %558 = vset.pattern.permute.xlu0 0
      %559 = vperm.xlu0 %558, %v437
      %v560 = vpop.permute.xlu0 %559
      %563 = vset.pattern.permute.xlu0 0
      %564 = vperm.xlu0 %563, %v438
      %v565 = vpop.permute.xlu0 %564
      %568 = vset.pattern.permute.xlu0 0
      %569 = vperm.xlu0 %568, %v439
      %v570 = vpop.permute.xlu0 %569
      %573 = vset.pattern.permute.xlu0 0
      %574 = vperm.xlu0 %573, %v440
      %v575 = vpop.permute.xlu0 %574
      %578 = vset.pattern.permute.xlu0 0
      %579 = vperm.xlu0 %578, %v441
      %v580 = vpop.permute.xlu0 %579
      %583 = vset.pattern.permute.xlu0 0
      %584 = vperm.xlu0 %583, %v442
      %v585 = vpop.permute.xlu0 %584
      %588 = vset.pattern.permute.xlu0 0
      %589 = vperm.xlu0 %588, %v443
      %v590 = vpop.permute.xlu0 %589
      %593 = vset.pattern.permute.xlu0 0
      %594 = vperm.xlu0 %593, %v444
      %v595 = vpop.permute.xlu0 %594
      %598 = vset.pattern.permute.xlu0 0
      %599 = vperm.xlu0 %598, %v445
      %v600 = vpop.permute.xlu0 %599
      %603 = vset.pattern.permute.xlu0 0
      %604 = vperm.xlu0 %603, %v446
      %v605 = vpop.permute.xlu0 %604
      %v607 = vmul.f32 %v383, %v450
      %v608 = vmul.f32 %v384, %v455
      %v609 = vmul.f32 %v385, %v460
      %v610 = vmul.f32 %v386, %v465
      %v611 = vmul.f32 %v387, %v470
      %v612 = vmul.f32 %v388, %v475
      %v613 = vmul.f32 %v389, %v480
      %v614 = vmul.f32 %v390, %v485
      %v615 = vmul.f32 %v391, %v490
      %v616 = vmul.f32 %v392, %v495
      %v617 = vmul.f32 %v393, %v500
      %v618 = vmul.f32 %v394, %v505
      %v619 = vmul.f32 %v395, %v510
      %v620 = vmul.f32 %v396, %v515
      %v621 = vmul.f32 %v397, %v520
      %v622 = vmul.f32 %v398, %v525
      %v623 = vmul.f32 %v399, %v530
      %v624 = vmul.f32 %v400, %v535
      %v625 = vmul.f32 %v401, %v540
      %v626 = vmul.f32 %v402, %v545
      %v627 = vmul.f32 %v403, %v550
      %v628 = vmul.f32 %v404, %v555
      %v629 = vmul.f32 %v405, %v560
      %v630 = vmul.f32 %v406, %v565
      %v631 = vmul.f32 %v407, %v570
      %v632 = vmul.f32 %v408, %v575
      %v633 = vmul.f32 %v409, %v580
      %v634 = vmul.f32 %v410, %v585
      %v635 = vmul.f32 %v411, %v590
      %v636 = vmul.f32 %v412, %v595
      %v637 = vmul.f32 %v413, %v600
      %v638 = vmul.f32 %v414, %v605
      %v639 = vld [vmem:[%s274] sm:$0xff]
      %v640 = vld [vmem:[%s274 + $0x8] sm:$0xff]
      %v641 = vld [vmem:[%s274 + $0x10] sm:$0xff]
      %v642 = vld [vmem:[%s274 + $0x18] sm:$0xff]
      %v643 = vld [vmem:[%s274 + $0x20] sm:$0xff]
      %v644 = vld [vmem:[%s274 + $0x28] sm:$0xff]
      %v645 = vld [vmem:[%s274 + $0x30] sm:$0xff]
      %v646 = vld [vmem:[%s274 + $0x38] sm:$0xff]
      %v647 = vld [vmem:[%s274 + $0x40] sm:$0xff]
      %v648 = vld [vmem:[%s274 + $0x48] sm:$0xff]
      %v649 = vld [vmem:[%s274 + $0x50] sm:$0xff]
      %v650 = vld [vmem:[%s274 + $0x58] sm:$0xff]
      %v651 = vld [vmem:[%s274 + $0x60] sm:$0xff]
      %v652 = vld [vmem:[%s274 + $0x68] sm:$0xff]
      %v653 = vld [vmem:[%s274 + $0x70] sm:$0xff]
      %v654 = vld [vmem:[%s274 + $0x78] sm:$0xff]
      %v655 = vld [vmem:[%s274 + $0x80] sm:$0xff]
      %v656 = vld [vmem:[%s274 + $0x88] sm:$0xff]
      %v657 = vld [vmem:[%s274 + $0x90] sm:$0xff]
      %v658 = vld [vmem:[%s274 + $0x98] sm:$0xff]
      %v659 = vld [vmem:[%s274 + $0xa0] sm:$0xff]
      %v660 = vld [vmem:[%s274 + $0xa8] sm:$0xff]
      %v661 = vld [vmem:[%s274 + $0xb0] sm:$0xff]
      %v662 = vld [vmem:[%s274 + $0xb8] sm:$0xff]
      %v663 = vld [vmem:[%s274 + $0xc0] sm:$0xff]
      %v664 = vld [vmem:[%s274 + $0xc8] sm:$0xff]
      %v665 = vld [vmem:[%s274 + $0xd0] sm:$0xff]
      %v666 = vld [vmem:[%s274 + $0xd8] sm:$0xff]
      %v667 = vld [vmem:[%s274 + $0xe0] sm:$0xff]
      %v668 = vld [vmem:[%s274 + $0xe8] sm:$0xff]
      %v669 = vld [vmem:[%s274 + $0xf0] sm:$0xff]
      %v670 = vld [vmem:[%s274 + $0xf8] sm:$0xff]
      %672 = vset.pattern.permute.xlu0 0
      %673 = vperm.xlu0 %672, %v287
      %v674 = vpop.permute.xlu0 %673
      %677 = vset.pattern.permute.xlu0 0
      %678 = vperm.xlu0 %677, %v288
      %v679 = vpop.permute.xlu0 %678
      %682 = vset.pattern.permute.xlu0 0
      %683 = vperm.xlu0 %682, %v289
      %v684 = vpop.permute.xlu0 %683
      %687 = vset.pattern.permute.xlu0 0
      %688 = vperm.xlu0 %687, %v290
      %v689 = vpop.permute.xlu0 %688
      %692 = vset.pattern.permute.xlu0 0
      %693 = vperm.xlu0 %692, %v291
      %v694 = vpop.permute.xlu0 %693
      %697 = vset.pattern.permute.xlu0 0
      %698 = vperm.xlu0 %697, %v292
      %v699 = vpop.permute.xlu0 %698
      %702 = vset.pattern.permute.xlu0 0
      %703 = vperm.xlu0 %702, %v293
      %v704 = vpop.permute.xlu0 %703
      %707 = vset.pattern.permute.xlu0 0
      %708 = vperm.xlu0 %707, %v294
      %v709 = vpop.permute.xlu0 %708
      %712 = vset.pattern.permute.xlu0 0
      %713 = vperm.xlu0 %712, %v295
      %v714 = vpop.permute.xlu0 %713
      %717 = vset.pattern.permute.xlu0 0
      %718 = vperm.xlu0 %717, %v296
      %v719 = vpop.permute.xlu0 %718
      %722 = vset.pattern.permute.xlu0 0
      %723 = vperm.xlu0 %722, %v297
      %v724 = vpop.permute.xlu0 %723
      %727 = vset.pattern.permute.xlu0 0
      %728 = vperm.xlu0 %727, %v298
      %v729 = vpop.permute.xlu0 %728
      %732 = vset.pattern.permute.xlu0 0
      %733 = vperm.xlu0 %732, %v299
      %v734 = vpop.permute.xlu0 %733
      %737 = vset.pattern.permute.xlu0 0
      %738 = vperm.xlu0 %737, %v300
      %v739 = vpop.permute.xlu0 %738
      %742 = vset.pattern.permute.xlu0 0
      %743 = vperm.xlu0 %742, %v301
      %v744 = vpop.permute.xlu0 %743
      %747 = vset.pattern.permute.xlu0 0
      %748 = vperm.xlu0 %747, %v302
      %v749 = vpop.permute.xlu0 %748
      %752 = vset.pattern.permute.xlu0 0
      %753 = vperm.xlu0 %752, %v303
      %v754 = vpop.permute.xlu0 %753
      %757 = vset.pattern.permute.xlu0 0
      %758 = vperm.xlu0 %757, %v304
      %v759 = vpop.permute.xlu0 %758
      %762 = vset.pattern.permute.xlu0 0
      %763 = vperm.xlu0 %762, %v305
      %v764 = vpop.permute.xlu0 %763
      %767 = vset.pattern.permute.xlu0 0
      %768 = vperm.xlu0 %767, %v306
      %v769 = vpop.permute.xlu0 %768
      %772 = vset.pattern.permute.xlu0 0
      %773 = vperm.xlu0 %772, %v307
      %v774 = vpop.permute.xlu0 %773
      %777 = vset.pattern.permute.xlu0 0
      %778 = vperm.xlu0 %777, %v308
      %v779 = vpop.permute.xlu0 %778
      %782 = vset.pattern.permute.xlu0 0
      %783 = vperm.xlu0 %782, %v309
      %v784 = vpop.permute.xlu0 %783
      %787 = vset.pattern.permute.xlu0 0
      %788 = vperm.xlu0 %787, %v310
      %v789 = vpop.permute.xlu0 %788
      %792 = vset.pattern.permute.xlu0 0
      %793 = vperm.xlu0 %792, %v311
      %v794 = vpop.permute.xlu0 %793
      %797 = vset.pattern.permute.xlu0 0
      %798 = vperm.xlu0 %797, %v312
      %v799 = vpop.permute.xlu0 %798
      %802 = vset.pattern.permute.xlu0 0
      %803 = vperm.xlu0 %802, %v313
      %v804 = vpop.permute.xlu0 %803
      %807 = vset.pattern.permute.xlu0 0
      %808 = vperm.xlu0 %807, %v314
      %v809 = vpop.permute.xlu0 %808
      %812 = vset.pattern.permute.xlu0 0
      %813 = vperm.xlu0 %812, %v315
      %v814 = vpop.permute.xlu0 %813
      %817 = vset.pattern.permute.xlu0 0
      %818 = vperm.xlu0 %817, %v316
      %v819 = vpop.permute.xlu0 %818
      %822 = vset.pattern.permute.xlu0 0
      %823 = vperm.xlu0 %822, %v317
      %v824 = vpop.permute.xlu0 %823
      %827 = vset.pattern.permute.xlu0 0
      %828 = vperm.xlu0 %827, %v318
      %v829 = vpop.permute.xlu0 %828
      %v831 = vmul.f32 %v639, %v674
      %v832 = vmul.f32 %v640, %v679
      %v833 = vmul.f32 %v641, %v684
      %v834 = vmul.f32 %v642, %v689
      %v835 = vmul.f32 %v643, %v694
      %v836 = vmul.f32 %v644, %v699
      %v837 = vmul.f32 %v645, %v704
      %v838 = vmul.f32 %v646, %v709
      %v839 = vmul.f32 %v647, %v714
      %v840 = vmul.f32 %v648, %v719
      %v841 = vmul.f32 %v649, %v724
      %v842 = vmul.f32 %v650, %v729
      %v843 = vmul.f32 %v651, %v734
      %v844 = vmul.f32 %v652, %v739
      %v845 = vmul.f32 %v653, %v744
      %v846 = vmul.f32 %v654, %v749
      %v847 = vmul.f32 %v655, %v754
      %v848 = vmul.f32 %v656, %v759
      %v849 = vmul.f32 %v657, %v764
      %v850 = vmul.f32 %v658, %v769
      %v851 = vmul.f32 %v659, %v774
      %v852 = vmul.f32 %v660, %v779
      %v853 = vmul.f32 %v661, %v784
      %v854 = vmul.f32 %v662, %v789
      %v855 = vmul.f32 %v663, %v794
      %v856 = vmul.f32 %v664, %v799
      %v857 = vmul.f32 %v665, %v804
      %v858 = vmul.f32 %v666, %v809
      %v859 = vmul.f32 %v667, %v814
      %v860 = vmul.f32 %v668, %v819
      %v861 = vmul.f32 %v669, %v824
      %v862 = vmul.f32 %v670, %v829
      %v863 = vmul.f32 %v351, %v351
      %v864 = vmul.f32 %v352, %v352
      %v865 = vmul.f32 %v353, %v353
      %v866 = vmul.f32 %v354, %v354
      %v867 = vmul.f32 %v355, %v355
      %v868 = vmul.f32 %v356, %v356
      %v869 = vmul.f32 %v357, %v357
      %v870 = vmul.f32 %v358, %v358
      %v871 = vmul.f32 %v359, %v359
      %v872 = vmul.f32 %v360, %v360
      %v873 = vmul.f32 %v361, %v361
      %v874 = vmul.f32 %v362, %v362
      %v875 = vmul.f32 %v363, %v363
      %v876 = vmul.f32 %v364, %v364
      %v877 = vmul.f32 %v365, %v365
      %v878 = vmul.f32 %v366, %v366
      %v879 = vmul.f32 %v367, %v367
      %v880 = vmul.f32 %v368, %v368
      %v881 = vmul.f32 %v369, %v369
      %v882 = vmul.f32 %v370, %v370
      %v883 = vmul.f32 %v371, %v371
      %v884 = vmul.f32 %v372, %v372
      %v885 = vmul.f32 %v373, %v373
      %v886 = vmul.f32 %v374, %v374
      %v887 = vmul.f32 %v375, %v375
      %v888 = vmul.f32 %v376, %v376
      %v889 = vmul.f32 %v377, %v377
      %v890 = vmul.f32 %v378, %v378
      %v891 = vmul.f32 %v379, %v379
      %v892 = vmul.f32 %v380, %v380
      %v893 = vmul.f32 %v381, %v381
      %v894 = vmul.f32 %v382, %v382
      %vm895 = vcmask 261120
      %v896 = vsel %vm895, %v863, 0.0
      %897 = vadd.xlane.f32.xlu0 %v896
      %v898 = vpop.xlane.xlu0 %897
      %v899 = vsel %vm895, %v864, 0.0
      %900 = vadd.xlane.f32.xlu0 %v899
      %v901 = vpop.xlane.xlu0 %900
      %v902 = vsel %vm895, %v865, 0.0
      %903 = vadd.xlane.f32.xlu0 %v902
      %v904 = vpop.xlane.xlu0 %903
      %v905 = vsel %vm895, %v866, 0.0
      %906 = vadd.xlane.f32.xlu0 %v905
      %v907 = vpop.xlane.xlu0 %906
      %v908 = vsel %vm895, %v867, 0.0
      %909 = vadd.xlane.f32.xlu0 %v908
      %v910 = vpop.xlane.xlu0 %909
      %v911 = vsel %vm895, %v868, 0.0
      %912 = vadd.xlane.f32.xlu0 %v911
      %v913 = vpop.xlane.xlu0 %912
      %v914 = vsel %vm895, %v869, 0.0
      %915 = vadd.xlane.f32.xlu0 %v914
      %v916 = vpop.xlane.xlu0 %915
      %v917 = vsel %vm895, %v870, 0.0
      %918 = vadd.xlane.f32.xlu0 %v917
      %v919 = vpop.xlane.xlu0 %918
      %v920 = vsel %vm895, %v871, 0.0
      %921 = vadd.xlane.f32.xlu0 %v920
      %v922 = vpop.xlane.xlu0 %921
      %v923 = vsel %vm895, %v872, 0.0
      %924 = vadd.xlane.f32.xlu0 %v923
      %v925 = vpop.xlane.xlu0 %924
      %v926 = vsel %vm895, %v873, 0.0
      %927 = vadd.xlane.f32.xlu0 %v926
      %v928 = vpop.xlane.xlu0 %927
      %v929 = vsel %vm895, %v874, 0.0
      %930 = vadd.xlane.f32.xlu0 %v929
      %v931 = vpop.xlane.xlu0 %930
      %v932 = vsel %vm895, %v875, 0.0
      %933 = vadd.xlane.f32.xlu0 %v932
      %v934 = vpop.xlane.xlu0 %933
      %v935 = vsel %vm895, %v876, 0.0
      %936 = vadd.xlane.f32.xlu0 %v935
      %v937 = vpop.xlane.xlu0 %936
      %v938 = vsel %vm895, %v877, 0.0
      %939 = vadd.xlane.f32.xlu0 %v938
      %v940 = vpop.xlane.xlu0 %939
      %v941 = vsel %vm895, %v878, 0.0
      %942 = vadd.xlane.f32.xlu0 %v941
      %v943 = vpop.xlane.xlu0 %942
      %v944 = vsel %vm895, %v879, 0.0
      %945 = vadd.xlane.f32.xlu0 %v944
      %v946 = vpop.xlane.xlu0 %945
      %v947 = vsel %vm895, %v880, 0.0
      %948 = vadd.xlane.f32.xlu0 %v947
      %v949 = vpop.xlane.xlu0 %948
      %v950 = vsel %vm895, %v881, 0.0
      %951 = vadd.xlane.f32.xlu0 %v950
      %v952 = vpop.xlane.xlu0 %951
      %v953 = vsel %vm895, %v882, 0.0
      %954 = vadd.xlane.f32.xlu0 %v953
      %v955 = vpop.xlane.xlu0 %954
      %v956 = vsel %vm895, %v883, 0.0
      %957 = vadd.xlane.f32.xlu0 %v956
      %v958 = vpop.xlane.xlu0 %957
      %v959 = vsel %vm895, %v884, 0.0
      %960 = vadd.xlane.f32.xlu0 %v959
      %v961 = vpop.xlane.xlu0 %960
      %v962 = vsel %vm895, %v885, 0.0
      %963 = vadd.xlane.f32.xlu0 %v962
      %v964 = vpop.xlane.xlu0 %963
      %v965 = vsel %vm895, %v886, 0.0
      %966 = vadd.xlane.f32.xlu0 %v965
      %v967 = vpop.xlane.xlu0 %966
      %v968 = vsel %vm895, %v887, 0.0
      %969 = vadd.xlane.f32.xlu0 %v968
      %v970 = vpop.xlane.xlu0 %969
      %v971 = vsel %vm895, %v888, 0.0
      %972 = vadd.xlane.f32.xlu0 %v971
      %v973 = vpop.xlane.xlu0 %972
      %v974 = vsel %vm895, %v889, 0.0
      %975 = vadd.xlane.f32.xlu0 %v974
      %v976 = vpop.xlane.xlu0 %975
      %v977 = vsel %vm895, %v890, 0.0
      %978 = vadd.xlane.f32.xlu0 %v977
      %v979 = vpop.xlane.xlu0 %978
      %v980 = vsel %vm895, %v891, 0.0
      %981 = vadd.xlane.f32.xlu0 %v980
      %v982 = vpop.xlane.xlu0 %981
      %v983 = vsel %vm895, %v892, 0.0
      %984 = vadd.xlane.f32.xlu0 %v983
      %v985 = vpop.xlane.xlu0 %984
      %v986 = vsel %vm895, %v893, 0.0
      %987 = vadd.xlane.f32.xlu0 %v986
      %v988 = vpop.xlane.xlu0 %987
      %v989 = vsel %vm895, %v894, 0.0
      %990 = vadd.xlane.f32.xlu0 %v989
      %v991 = vpop.xlane.xlu0 %990
      %v992 = vmul.f32 %v898, 0.5
      %v993 = vmul.f32 %v901, 0.5
      %v994 = vmul.f32 %v904, 0.5
      %v995 = vmul.f32 %v907, 0.5
      %v996 = vmul.f32 %v910, 0.5
      %v997 = vmul.f32 %v913, 0.5
      %v998 = vmul.f32 %v916, 0.5
      %v999 = vmul.f32 %v919, 0.5
      %v1000 = vmul.f32 %v922, 0.5
      %v1001 = vmul.f32 %v925, 0.5
      %v1002 = vmul.f32 %v928, 0.5
      %v1003 = vmul.f32 %v931, 0.5
      %v1004 = vmul.f32 %v934, 0.5
      %v1005 = vmul.f32 %v937, 0.5
      %v1006 = vmul.f32 %v940, 0.5
      %v1007 = vmul.f32 %v943, 0.5
      %v1008 = vmul.f32 %v946, 0.5
      %v1009 = vmul.f32 %v949, 0.5
      %v1010 = vmul.f32 %v952, 0.5
      %v1011 = vmul.f32 %v955, 0.5
      %v1012 = vmul.f32 %v958, 0.5
      %v1013 = vmul.f32 %v961, 0.5
      %v1014 = vmul.f32 %v964, 0.5
      %v1015 = vmul.f32 %v967, 0.5
      %v1016 = vmul.f32 %v970, 0.5
      %v1017 = vmul.f32 %v973, 0.5
      %v1018 = vmul.f32 %v976, 0.5
      %v1019 = vmul.f32 %v979, 0.5
      %v1020 = vmul.f32 %v982, 0.5
      %v1021 = vmul.f32 %v985, 0.5
      %v1022 = vmul.f32 %v988, 0.5
      %v1023 = vmul.f32 %v991, 0.5
      %v1024 = vmul.f32 %v607, %v607
      %v1025 = vmul.f32 %v608, %v608
      %v1026 = vmul.f32 %v609, %v609
      %v1027 = vmul.f32 %v610, %v610
      %v1028 = vmul.f32 %v611, %v611
      %v1029 = vmul.f32 %v612, %v612
      %v1030 = vmul.f32 %v613, %v613
      %v1031 = vmul.f32 %v614, %v614
      %v1032 = vmul.f32 %v615, %v615
      %v1033 = vmul.f32 %v616, %v616
      %v1034 = vmul.f32 %v617, %v617
      %v1035 = vmul.f32 %v618, %v618
      %v1036 = vmul.f32 %v619, %v619
      %v1037 = vmul.f32 %v620, %v620
      %v1038 = vmul.f32 %v621, %v621
      %v1039 = vmul.f32 %v622, %v622
      %v1040 = vmul.f32 %v623, %v623
      %v1041 = vmul.f32 %v624, %v624
      %v1042 = vmul.f32 %v625, %v625
      %v1043 = vmul.f32 %v626, %v626
      %v1044 = vmul.f32 %v627, %v627
      %v1045 = vmul.f32 %v628, %v628
      %v1046 = vmul.f32 %v629, %v629
      %v1047 = vmul.f32 %v630, %v630
      %v1048 = vmul.f32 %v631, %v631
      %v1049 = vmul.f32 %v632, %v632
      %v1050 = vmul.f32 %v633, %v633
      %v1051 = vmul.f32 %v634, %v634
      %v1052 = vmul.f32 %v635, %v635
      %v1053 = vmul.f32 %v636, %v636
      %v1054 = vmul.f32 %v637, %v637
      %v1055 = vmul.f32 %v638, %v638
      %v1056 = vsel %vm895, %v1024, 0.0
      %1057 = vadd.xlane.f32.xlu0 %v1056
      %v1058 = vpop.xlane.xlu0 %1057
      %v1059 = vsel %vm895, %v1025, 0.0
      %1060 = vadd.xlane.f32.xlu0 %v1059
      %v1061 = vpop.xlane.xlu0 %1060
      %v1062 = vsel %vm895, %v1026, 0.0
      %1063 = vadd.xlane.f32.xlu0 %v1062
      %v1064 = vpop.xlane.xlu0 %1063
      %v1065 = vsel %vm895, %v1027, 0.0
      %1066 = vadd.xlane.f32.xlu0 %v1065
      %v1067 = vpop.xlane.xlu0 %1066
      %v1068 = vsel %vm895, %v1028, 0.0
      %1069 = vadd.xlane.f32.xlu0 %v1068
      %v1070 = vpop.xlane.xlu0 %1069
      %v1071 = vsel %vm895, %v1029, 0.0
      %1072 = vadd.xlane.f32.xlu0 %v1071
      %v1073 = vpop.xlane.xlu0 %1072
      %v1074 = vsel %vm895, %v1030, 0.0
      %1075 = vadd.xlane.f32.xlu0 %v1074
      %v1076 = vpop.xlane.xlu0 %1075
      %v1077 = vsel %vm895, %v1031, 0.0
      %1078 = vadd.xlane.f32.xlu0 %v1077
      %v1079 = vpop.xlane.xlu0 %1078
      %v1080 = vsel %vm895, %v1032, 0.0
      %1081 = vadd.xlane.f32.xlu0 %v1080
      %v1082 = vpop.xlane.xlu0 %1081
      %v1083 = vsel %vm895, %v1033, 0.0
      %1084 = vadd.xlane.f32.xlu0 %v1083
      %v1085 = vpop.xlane.xlu0 %1084
      %v1086 = vsel %vm895, %v1034, 0.0
      %1087 = vadd.xlane.f32.xlu0 %v1086
      %v1088 = vpop.xlane.xlu0 %1087
      %v1089 = vsel %vm895, %v1035, 0.0
      %1090 = vadd.xlane.f32.xlu0 %v1089
      %v1091 = vpop.xlane.xlu0 %1090
      %v1092 = vsel %vm895, %v1036, 0.0
      %1093 = vadd.xlane.f32.xlu0 %v1092
      %v1094 = vpop.xlane.xlu0 %1093
      %v1095 = vsel %vm895, %v1037, 0.0
      %1096 = vadd.xlane.f32.xlu0 %v1095
      %v1097 = vpop.xlane.xlu0 %1096
      %v1098 = vsel %vm895, %v1038, 0.0
      %1099 = vadd.xlane.f32.xlu0 %v1098
      %v1100 = vpop.xlane.xlu0 %1099
      %v1101 = vsel %vm895, %v1039, 0.0
      %1102 = vadd.xlane.f32.xlu0 %v1101
      %v1103 = vpop.xlane.xlu0 %1102
      %v1104 = vsel %vm895, %v1040, 0.0
      %1105 = vadd.xlane.f32.xlu0 %v1104
      %v1106 = vpop.xlane.xlu0 %1105
      %v1107 = vsel %vm895, %v1041, 0.0
      %1108 = vadd.xlane.f32.xlu0 %v1107
      %v1109 = vpop.xlane.xlu0 %1108
      %v1110 = vsel %vm895, %v1042, 0.0
      %1111 = vadd.xlane.f32.xlu0 %v1110
      %v1112 = vpop.xlane.xlu0 %1111
      %v1113 = vsel %vm895, %v1043, 0.0
      %1114 = vadd.xlane.f32.xlu0 %v1113
      %v1115 = vpop.xlane.xlu0 %1114
      %v1116 = vsel %vm895, %v1044, 0.0
      %1117 = vadd.xlane.f32.xlu0 %v1116
      %v1118 = vpop.xlane.xlu0 %1117
      %v1119 = vsel %vm895, %v1045, 0.0
      %1120 = vadd.xlane.f32.xlu0 %v1119
      %v1121 = vpop.xlane.xlu0 %1120
      %v1122 = vsel %vm895, %v1046, 0.0
      %1123 = vadd.xlane.f32.xlu0 %v1122
      %v1124 = vpop.xlane.xlu0 %1123
      %v1125 = vsel %vm895, %v1047, 0.0
      %1126 = vadd.xlane.f32.xlu0 %v1125
      %v1127 = vpop.xlane.xlu0 %1126
      %v1128 = vsel %vm895, %v1048, 0.0
      %1129 = vadd.xlane.f32.xlu0 %v1128
      %v1130 = vpop.xlane.xlu0 %1129
      %v1131 = vsel %vm895, %v1049, 0.0
      %1132 = vadd.xlane.f32.xlu0 %v1131
      %v1133 = vpop.xlane.xlu0 %1132
      %v1134 = vsel %vm895, %v1050, 0.0
      %1135 = vadd.xlane.f32.xlu0 %v1134
      %v1136 = vpop.xlane.xlu0 %1135
      %v1137 = vsel %vm895, %v1051, 0.0
      %1138 = vadd.xlane.f32.xlu0 %v1137
      %v1139 = vpop.xlane.xlu0 %1138
      %v1140 = vsel %vm895, %v1052, 0.0
      %1141 = vadd.xlane.f32.xlu0 %v1140
      %v1142 = vpop.xlane.xlu0 %1141
      %v1143 = vsel %vm895, %v1053, 0.0
      %1144 = vadd.xlane.f32.xlu0 %v1143
      %v1145 = vpop.xlane.xlu0 %1144
      %v1146 = vsel %vm895, %v1054, 0.0
      %1147 = vadd.xlane.f32.xlu0 %v1146
      %v1148 = vpop.xlane.xlu0 %1147
      %v1149 = vsel %vm895, %v1055, 0.0
      %1150 = vadd.xlane.f32.xlu0 %v1149
      %v1151 = vpop.xlane.xlu0 %1150
      %v1152 = vmul.f32 %v1058, 0.5
      %v1153 = vmul.f32 %v1061, 0.5
      %v1154 = vmul.f32 %v1064, 0.5
      %v1155 = vmul.f32 %v1067, 0.5
      %v1156 = vmul.f32 %v1070, 0.5
      %v1157 = vmul.f32 %v1073, 0.5
      %v1158 = vmul.f32 %v1076, 0.5
      %v1159 = vmul.f32 %v1079, 0.5
      %v1160 = vmul.f32 %v1082, 0.5
      %v1161 = vmul.f32 %v1085, 0.5
      %v1162 = vmul.f32 %v1088, 0.5
      %v1163 = vmul.f32 %v1091, 0.5
      %v1164 = vmul.f32 %v1094, 0.5
      %v1165 = vmul.f32 %v1097, 0.5
      %v1166 = vmul.f32 %v1100, 0.5
      %v1167 = vmul.f32 %v1103, 0.5
      %v1168 = vmul.f32 %v1106, 0.5
      %v1169 = vmul.f32 %v1109, 0.5
      %v1170 = vmul.f32 %v1112, 0.5
      %v1171 = vmul.f32 %v1115, 0.5
      %v1172 = vmul.f32 %v1118, 0.5
      %v1173 = vmul.f32 %v1121, 0.5
      %v1174 = vmul.f32 %v1124, 0.5
      %v1175 = vmul.f32 %v1127, 0.5
      %v1176 = vmul.f32 %v1130, 0.5
      %v1177 = vmul.f32 %v1133, 0.5
      %v1178 = vmul.f32 %v1136, 0.5
      %v1179 = vmul.f32 %v1139, 0.5
      %v1180 = vmul.f32 %v1142, 0.5
      %v1181 = vmul.f32 %v1145, 0.5
      %v1182 = vmul.f32 %v1148, 0.5
      %v1183 = vmul.f32 %v1151, 0.5
      %v1184 = vld [vmem:[%s4] sm:$0xf]
      %v1185 = vld [vmem:[%s4 + $0x4] sm:$0xf]
      %v1186 = vld [vmem:[%s4 + $0x8] sm:$0xf]
      %v1187 = vld [vmem:[%s4 + $0xc] sm:$0xf]
      %v1188 = vld [vmem:[%s4 + $0x10] sm:$0xf]
      %v1189 = vld [vmem:[%s4 + $0x14] sm:$0xf]
      %v1190 = vld [vmem:[%s4 + $0x18] sm:$0xf]
      %v1191 = vld [vmem:[%s4 + $0x1c] sm:$0xf]
      %v1192 = vpack.c.bf16 %v352, %v351
      %v1193 = vpack.c.bf16 %v354, %v353
      %v1194 = vpack.c.bf16 %v356, %v355
      %v1195 = vpack.c.bf16 %v358, %v357
      %v1196 = vpack.c.bf16 %v360, %v359
      %v1197 = vpack.c.bf16 %v362, %v361
      %v1198 = vpack.c.bf16 %v364, %v363
      %v1199 = vpack.c.bf16 %v366, %v365
      %v1200 = vpack.c.bf16 %v368, %v367
      %v1201 = vpack.c.bf16 %v370, %v369
      %v1202 = vpack.c.bf16 %v372, %v371
      %v1203 = vpack.c.bf16 %v374, %v373
      %v1204 = vpack.c.bf16 %v376, %v375
      %v1205 = vpack.c.bf16 %v378, %v377
      %v1206 = vpack.c.bf16 %v380, %v379
      %v1207 = vpack.c.bf16 %v382, %v381
      %v1216 = vunpack.c.l.b16 %v1184
      %v1217 = vunpack.c.l.b16 %v1185
      %v1218 = vunpack.c.l.b16 %v1186
      %v1219 = vunpack.c.l.b16 %v1187
      %v1220 = vunpack.c.l.b16 %v1188
      %v1221 = vunpack.c.l.b16 %v1189
      %v1222 = vunpack.c.l.b16 %v1190
      %v1223 = vunpack.c.l.b16 %v1191
      %v1224 = vpack.c.b16 %v1217, %v1216
      %v1225 = vpack.c.b16 %v1219, %v1218
      %v1226 = vpack.c.b16 %v1221, %v1220
      %v1227 = vpack.c.b16 %v1223, %v1222
      %v1229 = vsel %vm895, %v1192, 0
      %v1232 = vsel %vm895, %v1193, 0
      %v1235 = vsel %vm895, %v1194, 0
      %v1238 = vsel %vm895, %v1195, 0
      %v1241 = vsel %vm895, %v1196, 0
      %v1244 = vsel %vm895, %v1197, 0
      %v1247 = vsel %vm895, %v1198, 0
      %v1250 = vsel %vm895, %v1199, 0
      %v1253 = vsel %vm895, %v1200, 0
      %v1256 = vsel %vm895, %v1201, 0
      %v1259 = vsel %vm895, %v1202, 0
      %v1262 = vsel %vm895, %v1203, 0
      %v1265 = vsel %vm895, %v1204, 0
      %v1268 = vsel %vm895, %v1205, 0
      %v1271 = vsel %vm895, %v1206, 0
      %v1274 = vsel %vm895, %v1207, 0
      %v1277 = vsel %vm895, %v1224, 0
      %v1280 = vsel %vm895, %v1225, 0
      %v1283 = vsel %vm895, %v1226, 0
      %v1286 = vsel %vm895, %v1227, 0
      %1288 = vmatprep.subr.bf16.mxu0 0
      %1289 = vmatpush1.bf16.xpose.msra.mxu0 %v1277
      %1290 = vmatprep.subr.bf16.mxu0 0
      %1291 = vmatpush1.bf16.xpose.msra.mxu0 %v1280
      %1292 = vmatprep.subr.bf16.mxu0 0
      %1293 = vmatpush1.bf16.xpose.msra.mxu0 %v1283
      %1294 = vmatprep.subr.bf16.mxu0 0
      %1295 = vmatpush1.bf16.xpose.msra.mxu0 %v1286
      %1296 = vmatprep.subr.bf16.mxu0 0
      %1297 = vmatpush1.bf16.xpose.msra.mxu0 0
      %1298 = vmatprep.subr.bf16.mxu0 0
      %1299 = vmatpush1.bf16.xpose.msra.mxu0 0
      %1300 = vmatprep.subr.bf16.mxu0 0
      %1301 = vmatpush1.bf16.xpose.msra.mxu0 0
      %1302 = vmatprep.subr.bf16.mxu0 0
      %1303 = vmatpush1.bf16.xpose.msra.mxu0 0
      %1304 = vmatprep.subr.bf16.mxu0 0
      %1305 = vmatpush1.bf16.xpose.msra.mxu0 0
      %1306 = vmatprep.subr.bf16.mxu0 0
      %1307 = vmatpush1.bf16.xpose.msra.mxu0 0
      %1308 = vmatprep.subr.bf16.mxu0 0
      %1309 = vmatpush1.bf16.xpose.msra.mxu0 0
      %1310 = vmatprep.subr.bf16.mxu0 0
      %1311 = vmatpush1.bf16.xpose.msra.mxu0 0
      %1312 = vmatprep.subr.bf16.mxu0 0
      %1313 = vmatpush1.bf16.xpose.msra.mxu0 0
      %1314 = vmatprep.subr.bf16.mxu0 0
      %1315 = vmatpush1.bf16.xpose.msra.mxu0 0
      %1316 = vmatprep.subr.bf16.mxu0 0
      %1317 = vmatpush1.bf16.xpose.msra.mxu0 0
      %1318 = vmatprep.subr.bf16.mxu0 0
      %1319 = vmatpush1.bf16.xpose.msra.mxu0 0
      %1320 = vmatprep.mubr.bf16.mxu0 0
      %1321 = vmatmul.mubr.bf16.gmra.mrb[0].mxu0 %v1229
      %v1322 = vpop.f32.mrb[0].mxu0
      %v1323 = vadd.f32 0.0, %v1322
      %v1324 = vpop.f32.mrb[0].mxu0
      %v1325 = vpop.f32.mrb[0].mxu0
      %v1326 = vadd.f32 0.0, %v1325
      %v1327 = vpop.f32.mrb[0].mxu0
      %1328 = vmatprep.mubr.bf16.mxu0 0
      %1329 = vmatmul.mubr.bf16.gmra.mrb[0].mxu0 %v1232
      %v1330 = vpop.f32.mrb[0].mxu0
      %v1331 = vadd.f32 0.0, %v1330
      %v1332 = vpop.f32.mrb[0].mxu0
      %v1333 = vpop.f32.mrb[0].mxu0
      %v1334 = vadd.f32 0.0, %v1333
      %v1335 = vpop.f32.mrb[0].mxu0
      %1336 = vmatprep.mubr.bf16.mxu0 0
      %1337 = vmatmul.mubr.bf16.gmra.mrb[0].mxu0 %v1235
      %v1338 = vpop.f32.mrb[0].mxu0
      %v1339 = vadd.f32 0.0, %v1338
      %v1340 = vpop.f32.mrb[0].mxu0
      %v1341 = vpop.f32.mrb[0].mxu0
      %v1342 = vadd.f32 0.0, %v1341
      %v1343 = vpop.f32.mrb[0].mxu0
      %1344 = vmatprep.mubr.bf16.mxu0 0
      %1345 = vmatmul.mubr.bf16.gmra.mrb[0].mxu0 %v1238
      %v1346 = vpop.f32.mrb[0].mxu0
      %v1347 = vadd.f32 0.0, %v1346
      %v1348 = vpop.f32.mrb[0].mxu0
      %v1349 = vpop.f32.mrb[0].mxu0
      %v1350 = vadd.f32 0.0, %v1349
      %v1351 = vpop.f32.mrb[0].mxu0
      %1352 = vmatprep.mubr.bf16.mxu0 0
      %1353 = vmatmul.mubr.bf16.gmra.mrb[0].mxu0 %v1241
      %v1354 = vpop.f32.mrb[0].mxu0
      %v1355 = vadd.f32 0.0, %v1354
      %v1356 = vpop.f32.mrb[0].mxu0
      %v1357 = vpop.f32.mrb[0].mxu0
      %v1358 = vadd.f32 0.0, %v1357
      %v1359 = vpop.f32.mrb[0].mxu0
      %1360 = vmatprep.mubr.bf16.mxu0 0
      %1361 = vmatmul.mubr.bf16.gmra.mrb[0].mxu0 %v1244
      %v1362 = vpop.f32.mrb[0].mxu0
      %v1363 = vadd.f32 0.0, %v1362
      %v1364 = vpop.f32.mrb[0].mxu0
      %v1365 = vpop.f32.mrb[0].mxu0
      %v1366 = vadd.f32 0.0, %v1365
      %v1367 = vpop.f32.mrb[0].mxu0
      %1368 = vmatprep.mubr.bf16.mxu0 0
      %1369 = vmatmul.mubr.bf16.gmra.mrb[0].mxu0 %v1247
      %v1370 = vpop.f32.mrb[0].mxu0
      %v1371 = vadd.f32 0.0, %v1370
      %v1372 = vpop.f32.mrb[0].mxu0
      %v1373 = vpop.f32.mrb[0].mxu0
      %v1374 = vadd.f32 0.0, %v1373
      %v1375 = vpop.f32.mrb[0].mxu0
      %1376 = vmatprep.mubr.bf16.mxu0 0
      %1377 = vmatmul.mubr.bf16.gmra.mrb[0].mxu0 %v1250
      %v1378 = vpop.f32.mrb[0].mxu0
      %v1379 = vadd.f32 0.0, %v1378
      %v1380 = vpop.f32.mrb[0].mxu0
      %v1381 = vpop.f32.mrb[0].mxu0
      %v1382 = vadd.f32 0.0, %v1381
      %v1383 = vpop.f32.mrb[0].mxu0
      %1384 = vmatprep.mubr.bf16.mxu0 0
      %1385 = vmatmul.mubr.bf16.gmra.mrb[0].mxu0 %v1253
      %v1386 = vpop.f32.mrb[0].mxu0
      %v1387 = vadd.f32 0.0, %v1386
      %v1388 = vpop.f32.mrb[0].mxu0
      %v1389 = vpop.f32.mrb[0].mxu0
      %v1390 = vadd.f32 0.0, %v1389
      %v1391 = vpop.f32.mrb[0].mxu0
      %1392 = vmatprep.mubr.bf16.mxu0 0
      %1393 = vmatmul.mubr.bf16.gmra.mrb[0].mxu0 %v1256
      %v1394 = vpop.f32.mrb[0].mxu0
      %v1395 = vadd.f32 0.0, %v1394
      %v1396 = vpop.f32.mrb[0].mxu0
      %v1397 = vpop.f32.mrb[0].mxu0
      %v1398 = vadd.f32 0.0, %v1397
      %v1399 = vpop.f32.mrb[0].mxu0
      %1400 = vmatprep.mubr.bf16.mxu0 0
      %1401 = vmatmul.mubr.bf16.gmra.mrb[0].mxu0 %v1259
      %v1402 = vpop.f32.mrb[0].mxu0
      %v1403 = vadd.f32 0.0, %v1402
      %v1404 = vpop.f32.mrb[0].mxu0
      %v1405 = vpop.f32.mrb[0].mxu0
      %v1406 = vadd.f32 0.0, %v1405
      %v1407 = vpop.f32.mrb[0].mxu0
      %1408 = vmatprep.mubr.bf16.mxu0 0
      %1409 = vmatmul.mubr.bf16.gmra.mrb[0].mxu0 %v1262
      %v1410 = vpop.f32.mrb[0].mxu0
      %v1411 = vadd.f32 0.0, %v1410
      %v1412 = vpop.f32.mrb[0].mxu0
      %v1413 = vpop.f32.mrb[0].mxu0
      %v1414 = vadd.f32 0.0, %v1413
      %v1415 = vpop.f32.mrb[0].mxu0
      %1416 = vmatprep.mubr.bf16.mxu0 0
      %1417 = vmatmul.mubr.bf16.gmra.mrb[0].mxu0 %v1265
      %v1418 = vpop.f32.mrb[0].mxu0
      %v1419 = vadd.f32 0.0, %v1418
      %v1420 = vpop.f32.mrb[0].mxu0
      %v1421 = vpop.f32.mrb[0].mxu0
      %v1422 = vadd.f32 0.0, %v1421
      %v1423 = vpop.f32.mrb[0].mxu0
      %1424 = vmatprep.mubr.bf16.mxu0 0
      %1425 = vmatmul.mubr.bf16.gmra.mrb[0].mxu0 %v1268
      %v1426 = vpop.f32.mrb[0].mxu0
      %v1427 = vadd.f32 0.0, %v1426
      %v1428 = vpop.f32.mrb[0].mxu0
      %v1429 = vpop.f32.mrb[0].mxu0
      %v1430 = vadd.f32 0.0, %v1429
      %v1431 = vpop.f32.mrb[0].mxu0
      %1432 = vmatprep.mubr.bf16.mxu0 0
      %1433 = vmatmul.mubr.bf16.gmra.mrb[0].mxu0 %v1271
      %v1434 = vpop.f32.mrb[0].mxu0
      %v1435 = vadd.f32 0.0, %v1434
      %v1436 = vpop.f32.mrb[0].mxu0
      %v1437 = vpop.f32.mrb[0].mxu0
      %v1438 = vadd.f32 0.0, %v1437
      %v1439 = vpop.f32.mrb[0].mxu0
      %1440 = vmatprep.mubr.bf16.mxu0 0
      %1441 = vmatmul.mubr.bf16.gmra.mrb[0].mxu0 %v1274
      %v1442 = vpop.f32.mrb[0].mxu0
      %v1443 = vadd.f32 0.0, %v1442
      %v1444 = vpop.f32.mrb[0].mxu0
      %v1445 = vpop.f32.mrb[0].mxu0
      %v1446 = vadd.f32 0.0, %v1445
      %v1447 = vpop.f32.mrb[0].mxu0
      %1448 = vdwg.mxu0
      %v1449 = vpack.c.bf16 %v608, %v607
      %v1450 = vpack.c.bf16 %v610, %v609
      %v1451 = vpack.c.bf16 %v612, %v611
      %v1452 = vpack.c.bf16 %v614, %v613
      %v1453 = vpack.c.bf16 %v616, %v615
      %v1454 = vpack.c.bf16 %v618, %v617
      %v1455 = vpack.c.bf16 %v620, %v619
      %v1456 = vpack.c.bf16 %v622, %v621
      %v1457 = vpack.c.bf16 %v624, %v623
      %v1458 = vpack.c.bf16 %v626, %v625
      %v1459 = vpack.c.bf16 %v628, %v627
      %v1460 = vpack.c.bf16 %v630, %v629
      %v1461 = vpack.c.bf16 %v632, %v631
      %v1462 = vpack.c.bf16 %v634, %v633
      %v1463 = vpack.c.bf16 %v636, %v635
      %v1464 = vpack.c.bf16 %v638, %v637
      %v1466 = vsel %vm895, %v1449, 0
      %v1469 = vsel %vm895, %v1450, 0
      %v1472 = vsel %vm895, %v1451, 0
      %v1475 = vsel %vm895, %v1452, 0
      %v1478 = vsel %vm895, %v1453, 0
      %v1481 = vsel %vm895, %v1454, 0
      %v1484 = vsel %vm895, %v1455, 0
      %v1487 = vsel %vm895, %v1456, 0
      %v1490 = vsel %vm895, %v1457, 0
      %v1493 = vsel %vm895, %v1458, 0
      %v1496 = vsel %vm895, %v1459, 0
      %v1499 = vsel %vm895, %v1460, 0
      %v1502 = vsel %vm895, %v1461, 0
      %v1505 = vsel %vm895, %v1462, 0
      %v1508 = vsel %vm895, %v1463, 0
      %v1511 = vsel %vm895, %v1464, 0
      %1513 = vmatprep.subr.bf16.mxu0 0
      %1514 = vmatpush1.bf16.xpose.msra.mxu0 %v1277
      %1515 = vmatprep.subr.bf16.mxu0 0
      %1516 = vmatpush1.bf16.xpose.msra.mxu0 %v1280
      %1517 = vmatprep.subr.bf16.mxu0 0
      %1518 = vmatpush1.bf16.xpose.msra.mxu0 %v1283
      %1519 = vmatprep.subr.bf16.mxu0 0
      %1520 = vmatpush1.bf16.xpose.msra.mxu0 %v1286
      %1521 = vmatprep.subr.bf16.mxu0 0
      %1522 = vmatpush1.bf16.xpose.msra.mxu0 0
      %1523 = vmatprep.subr.bf16.mxu0 0
      %1524 = vmatpush1.bf16.xpose.msra.mxu0 0
      %1525 = vmatprep.subr.bf16.mxu0 0
      %1526 = vmatpush1.bf16.xpose.msra.mxu0 0
      %1527 = vmatprep.subr.bf16.mxu0 0
      %1528 = vmatpush1.bf16.xpose.msra.mxu0 0
      %1529 = vmatprep.subr.bf16.mxu0 0
      %1530 = vmatpush1.bf16.xpose.msra.mxu0 0
      %1531 = vmatprep.subr.bf16.mxu0 0
      %1532 = vmatpush1.bf16.xpose.msra.mxu0 0
      %1533 = vmatprep.subr.bf16.mxu0 0
      %1534 = vmatpush1.bf16.xpose.msra.mxu0 0
      %1535 = vmatprep.subr.bf16.mxu0 0
      %1536 = vmatpush1.bf16.xpose.msra.mxu0 0
      %1537 = vmatprep.subr.bf16.mxu0 0
      %1538 = vmatpush1.bf16.xpose.msra.mxu0 0
      %1539 = vmatprep.subr.bf16.mxu0 0
      %1540 = vmatpush1.bf16.xpose.msra.mxu0 0
      %1541 = vmatprep.subr.bf16.mxu0 0
      %1542 = vmatpush1.bf16.xpose.msra.mxu0 0
      %1543 = vmatprep.subr.bf16.mxu0 0
      %1544 = vmatpush1.bf16.xpose.msra.mxu0 0
      %1545 = vmatprep.mubr.bf16.mxu0 0
      %1546 = vmatmul.mubr.bf16.gmra.mrb[0].mxu0 %v1466
      %v1547 = vpop.f32.mrb[0].mxu0
      %v1548 = vadd.f32 0.0, %v1547
      %v1549 = vpop.f32.mrb[0].mxu0
      %v1550 = vpop.f32.mrb[0].mxu0
      %v1551 = vadd.f32 0.0, %v1550
      %v1552 = vpop.f32.mrb[0].mxu0
      %1553 = vmatprep.mubr.bf16.mxu0 0
      %1554 = vmatmul.mubr.bf16.gmra.mrb[0].mxu0 %v1469
      %v1555 = vpop.f32.mrb[0].mxu0
      %v1556 = vadd.f32 0.0, %v1555
      %v1557 = vpop.f32.mrb[0].mxu0
      %v1558 = vpop.f32.mrb[0].mxu0
      %v1559 = vadd.f32 0.0, %v1558
      %v1560 = vpop.f32.mrb[0].mxu0
      %1561 = vmatprep.mubr.bf16.mxu0 0
      %1562 = vmatmul.mubr.bf16.gmra.mrb[0].mxu0 %v1472
      %v1563 = vpop.f32.mrb[0].mxu0
      %v1564 = vadd.f32 0.0, %v1563
      %v1565 = vpop.f32.mrb[0].mxu0
      %v1566 = vpop.f32.mrb[0].mxu0
      %v1567 = vadd.f32 0.0, %v1566
      %v1568 = vpop.f32.mrb[0].mxu0
      %1569 = vmatprep.mubr.bf16.mxu0 0
      %1570 = vmatmul.mubr.bf16.gmra.mrb[0].mxu0 %v1475
      %v1571 = vpop.f32.mrb[0].mxu0
      %v1572 = vadd.f32 0.0, %v1571
      %v1573 = vpop.f32.mrb[0].mxu0
      %v1574 = vpop.f32.mrb[0].mxu0
      %v1575 = vadd.f32 0.0, %v1574
      %v1576 = vpop.f32.mrb[0].mxu0
      %1577 = vmatprep.mubr.bf16.mxu0 0
      %1578 = vmatmul.mubr.bf16.gmra.mrb[0].mxu0 %v1478
      %v1579 = vpop.f32.mrb[0].mxu0
      %v1580 = vadd.f32 0.0, %v1579
      %v1581 = vpop.f32.mrb[0].mxu0
      %v1582 = vpop.f32.mrb[0].mxu0
      %v1583 = vadd.f32 0.0, %v1582
      %v1584 = vpop.f32.mrb[0].mxu0
      %1585 = vmatprep.mubr.bf16.mxu0 0
      %1586 = vmatmul.mubr.bf16.gmra.mrb[0].mxu0 %v1481
      %v1587 = vpop.f32.mrb[0].mxu0
      %v1588 = vadd.f32 0.0, %v1587
      %v1589 = vpop.f32.mrb[0].mxu0
      %v1590 = vpop.f32.mrb[0].mxu0
      %v1591 = vadd.f32 0.0, %v1590
      %v1592 = vpop.f32.mrb[0].mxu0
      %1593 = vmatprep.mubr.bf16.mxu0 0
      %1594 = vmatmul.mubr.bf16.gmra.mrb[0].mxu0 %v1484
      %v1595 = vpop.f32.mrb[0].mxu0
      %v1596 = vadd.f32 0.0, %v1595
      %v1597 = vpop.f32.mrb[0].mxu0
      %v1598 = vpop.f32.mrb[0].mxu0
      %v1599 = vadd.f32 0.0, %v1598
      %v1600 = vpop.f32.mrb[0].mxu0
      %1601 = vmatprep.mubr.bf16.mxu0 0
      %1602 = vmatmul.mubr.bf16.gmra.mrb[0].mxu0 %v1487
      %v1603 = vpop.f32.mrb[0].mxu0
      %v1604 = vadd.f32 0.0, %v1603
      %v1605 = vpop.f32.mrb[0].mxu0
      %v1606 = vpop.f32.mrb[0].mxu0
      %v1607 = vadd.f32 0.0, %v1606
      %v1608 = vpop.f32.mrb[0].mxu0
      %1609 = vmatprep.mubr.bf16.mxu0 0
      %1610 = vmatmul.mubr.bf16.gmra.mrb[0].mxu0 %v1490
      %v1611 = vpop.f32.mrb[0].mxu0
      %v1612 = vadd.f32 0.0, %v1611
      %v1613 = vpop.f32.mrb[0].mxu0
      %v1614 = vpop.f32.mrb[0].mxu0
      %v1615 = vadd.f32 0.0, %v1614
      %v1616 = vpop.f32.mrb[0].mxu0
      %1617 = vmatprep.mubr.bf16.mxu0 0
      %1618 = vmatmul.mubr.bf16.gmra.mrb[0].mxu0 %v1493
      %v1619 = vpop.f32.mrb[0].mxu0
      %v1620 = vadd.f32 0.0, %v1619
      %v1621 = vpop.f32.mrb[0].mxu0
      %v1622 = vpop.f32.mrb[0].mxu0
      %v1623 = vadd.f32 0.0, %v1622
      %v1624 = vpop.f32.mrb[0].mxu0
      %1625 = vmatprep.mubr.bf16.mxu0 0
      %1626 = vmatmul.mubr.bf16.gmra.mrb[0].mxu0 %v1496
      %v1627 = vpop.f32.mrb[0].mxu0
      %v1628 = vadd.f32 0.0, %v1627
      %v1629 = vpop.f32.mrb[0].mxu0
      %v1630 = vpop.f32.mrb[0].mxu0
      %v1631 = vadd.f32 0.0, %v1630
      %v1632 = vpop.f32.mrb[0].mxu0
      %1633 = vmatprep.mubr.bf16.mxu0 0
      %1634 = vmatmul.mubr.bf16.gmra.mrb[0].mxu0 %v1499
      %v1635 = vpop.f32.mrb[0].mxu0
      %v1636 = vadd.f32 0.0, %v1635
      %v1637 = vpop.f32.mrb[0].mxu0
      %v1638 = vpop.f32.mrb[0].mxu0
      %v1639 = vadd.f32 0.0, %v1638
      %v1640 = vpop.f32.mrb[0].mxu0
      %1641 = vmatprep.mubr.bf16.mxu0 0
      %1642 = vmatmul.mubr.bf16.gmra.mrb[0].mxu0 %v1502
      %v1643 = vpop.f32.mrb[0].mxu0
      %v1644 = vadd.f32 0.0, %v1643
      %v1645 = vpop.f32.mrb[0].mxu0
      %v1646 = vpop.f32.mrb[0].mxu0
      %v1647 = vadd.f32 0.0, %v1646
      %v1648 = vpop.f32.mrb[0].mxu0
      %1649 = vmatprep.mubr.bf16.mxu0 0
      %1650 = vmatmul.mubr.bf16.gmra.mrb[0].mxu0 %v1505
      %v1651 = vpop.f32.mrb[0].mxu0
      %v1652 = vadd.f32 0.0, %v1651
      %v1653 = vpop.f32.mrb[0].mxu0
      %v1654 = vpop.f32.mrb[0].mxu0
      %v1655 = vadd.f32 0.0, %v1654
      %v1656 = vpop.f32.mrb[0].mxu0
      %1657 = vmatprep.mubr.bf16.mxu0 0
      %1658 = vmatmul.mubr.bf16.gmra.mrb[0].mxu0 %v1508
      %v1659 = vpop.f32.mrb[0].mxu0
      %v1660 = vadd.f32 0.0, %v1659
      %v1661 = vpop.f32.mrb[0].mxu0
      %v1662 = vpop.f32.mrb[0].mxu0
      %v1663 = vadd.f32 0.0, %v1662
      %v1664 = vpop.f32.mrb[0].mxu0
      %1665 = vmatprep.mubr.bf16.mxu0 0
      %1666 = vmatmul.mubr.bf16.gmra.mrb[0].mxu0 %v1511
      %v1667 = vpop.f32.mrb[0].mxu0
      %v1668 = vadd.f32 0.0, %v1667
      %v1669 = vpop.f32.mrb[0].mxu0
      %v1670 = vpop.f32.mrb[0].mxu0
      %v1671 = vadd.f32 0.0, %v1670
      %v1672 = vpop.f32.mrb[0].mxu0
      %1673 = vdwg.mxu0
      %vm1674 = vcmask 523264
      %v1675 = vsel %vm1674, %v1323, -inf
      %1676 = vmax.xlane.f32.xlu0 %v1675
      %v1677 = vpop.xlane.xlu0 %1676
      %v1678 = vsel %vm1674, %v1326, -inf
      %1679 = vmax.xlane.f32.xlu0 %v1678
      %v1680 = vpop.xlane.xlu0 %1679
      %v1681 = vsel %vm1674, %v1331, -inf
      %1682 = vmax.xlane.f32.xlu0 %v1681
      %v1683 = vpop.xlane.xlu0 %1682
      %v1684 = vsel %vm1674, %v1334, -inf
      %1685 = vmax.xlane.f32.xlu0 %v1684
      %v1686 = vpop.xlane.xlu0 %1685
      %v1687 = vsel %vm1674, %v1339, -inf
      %1688 = vmax.xlane.f32.xlu0 %v1687
      %v1689 = vpop.xlane.xlu0 %1688
      %v1690 = vsel %vm1674, %v1342, -inf
      %1691 = vmax.xlane.f32.xlu0 %v1690
      %v1692 = vpop.xlane.xlu0 %1691
      %v1693 = vsel %vm1674, %v1347, -inf
      %1694 = vmax.xlane.f32.xlu0 %v1693
      %v1695 = vpop.xlane.xlu0 %1694
      %v1696 = vsel %vm1674, %v1350, -inf
      %1697 = vmax.xlane.f32.xlu0 %v1696
      %v1698 = vpop.xlane.xlu0 %1697
      %v1699 = vsel %vm1674, %v1355, -inf
      %1700 = vmax.xlane.f32.xlu0 %v1699
      %v1701 = vpop.xlane.xlu0 %1700
      %v1702 = vsel %vm1674, %v1358, -inf
      %1703 = vmax.xlane.f32.xlu0 %v1702
      %v1704 = vpop.xlane.xlu0 %1703
      %v1705 = vsel %vm1674, %v1363, -inf
      %1706 = vmax.xlane.f32.xlu0 %v1705
      %v1707 = vpop.xlane.xlu0 %1706
      %v1708 = vsel %vm1674, %v1366, -inf
      %1709 = vmax.xlane.f32.xlu0 %v1708
      %v1710 = vpop.xlane.xlu0 %1709
      %v1711 = vsel %vm1674, %v1371, -inf
      %1712 = vmax.xlane.f32.xlu0 %v1711
      %v1713 = vpop.xlane.xlu0 %1712
      %v1714 = vsel %vm1674, %v1374, -inf
      %1715 = vmax.xlane.f32.xlu0 %v1714
      %v1716 = vpop.xlane.xlu0 %1715
      %v1717 = vsel %vm1674, %v1379, -inf
      %1718 = vmax.xlane.f32.xlu0 %v1717
      %v1719 = vpop.xlane.xlu0 %1718
      %v1720 = vsel %vm1674, %v1382, -inf
      %1721 = vmax.xlane.f32.xlu0 %v1720
      %v1722 = vpop.xlane.xlu0 %1721
      %v1723 = vsel %vm1674, %v1387, -inf
      %1724 = vmax.xlane.f32.xlu0 %v1723
      %v1725 = vpop.xlane.xlu0 %1724
      %v1726 = vsel %vm1674, %v1390, -inf
      %1727 = vmax.xlane.f32.xlu0 %v1726
      %v1728 = vpop.xlane.xlu0 %1727
      %v1729 = vsel %vm1674, %v1395, -inf
      %1730 = vmax.xlane.f32.xlu0 %v1729
      %v1731 = vpop.xlane.xlu0 %1730
      %v1732 = vsel %vm1674, %v1398, -inf
      %1733 = vmax.xlane.f32.xlu0 %v1732
      %v1734 = vpop.xlane.xlu0 %1733
      %v1735 = vsel %vm1674, %v1403, -inf
      %1736 = vmax.xlane.f32.xlu0 %v1735
      %v1737 = vpop.xlane.xlu0 %1736
      %v1738 = vsel %vm1674, %v1406, -inf
      %1739 = vmax.xlane.f32.xlu0 %v1738
      %v1740 = vpop.xlane.xlu0 %1739
      %v1741 = vsel %vm1674, %v1411, -inf
      %1742 = vmax.xlane.f32.xlu0 %v1741
      %v1743 = vpop.xlane.xlu0 %1742
      %v1744 = vsel %vm1674, %v1414, -inf
      %1745 = vmax.xlane.f32.xlu0 %v1744
      %v1746 = vpop.xlane.xlu0 %1745
      %v1747 = vsel %vm1674, %v1419, -inf
      %1748 = vmax.xlane.f32.xlu0 %v1747
      %v1749 = vpop.xlane.xlu0 %1748
      %v1750 = vsel %vm1674, %v1422, -inf
      %1751 = vmax.xlane.f32.xlu0 %v1750
      %v1752 = vpop.xlane.xlu0 %1751
      %v1753 = vsel %vm1674, %v1427, -inf
      %1754 = vmax.xlane.f32.xlu0 %v1753
      %v1755 = vpop.xlane.xlu0 %1754
      %v1756 = vsel %vm1674, %v1430, -inf
      %1757 = vmax.xlane.f32.xlu0 %v1756
      %v1758 = vpop.xlane.xlu0 %1757
      %v1759 = vsel %vm1674, %v1435, -inf
      %1760 = vmax.xlane.f32.xlu0 %v1759
      %v1761 = vpop.xlane.xlu0 %1760
      %v1762 = vsel %vm1674, %v1438, -inf
      %1763 = vmax.xlane.f32.xlu0 %v1762
      %v1764 = vpop.xlane.xlu0 %1763
      %v1765 = vsel %vm1674, %v1443, -inf
      %1766 = vmax.xlane.f32.xlu0 %v1765
      %v1767 = vpop.xlane.xlu0 %1766
      %v1768 = vsel %vm1674, %v1446, -inf
      %1769 = vmax.xlane.f32.xlu0 %v1768
      %v1770 = vpop.xlane.xlu0 %1769
      %v1771 = vsub.f32 %v1323, %v992
      %v1772 = vsub.f32 %v1326, %v993
      %v1773 = vsub.f32 %v1331, %v994
      %v1774 = vsub.f32 %v1334, %v995
      %v1775 = vsub.f32 %v1339, %v996
      %v1776 = vsub.f32 %v1342, %v997
      %v1777 = vsub.f32 %v1347, %v998
      %v1778 = vsub.f32 %v1350, %v999
      %v1779 = vsub.f32 %v1355, %v1000
      %v1780 = vsub.f32 %v1358, %v1001
      %v1781 = vsub.f32 %v1363, %v1002
      %v1782 = vsub.f32 %v1366, %v1003
      %v1783 = vsub.f32 %v1371, %v1004
      %v1784 = vsub.f32 %v1374, %v1005
      %v1785 = vsub.f32 %v1379, %v1006
      %v1786 = vsub.f32 %v1382, %v1007
      %v1787 = vsub.f32 %v1387, %v1008
      %v1788 = vsub.f32 %v1390, %v1009
      %v1789 = vsub.f32 %v1395, %v1010
      %v1790 = vsub.f32 %v1398, %v1011
      %v1791 = vsub.f32 %v1403, %v1012
      %v1792 = vsub.f32 %v1406, %v1013
      %v1793 = vsub.f32 %v1411, %v1014
      %v1794 = vsub.f32 %v1414, %v1015
      %v1795 = vsub.f32 %v1419, %v1016
      %v1796 = vsub.f32 %v1422, %v1017
      %v1797 = vsub.f32 %v1427, %v1018
      %v1798 = vsub.f32 %v1430, %v1019
      %v1799 = vsub.f32 %v1435, %v1020
      %v1800 = vsub.f32 %v1438, %v1021
      %v1801 = vsub.f32 %v1443, %v1022
      %v1802 = vsub.f32 %v1446, %v1023
      %v1803 = vsub.f32 %v1771, %v1677
      %v1804 = vsub.f32 %v1772, %v1680
      %v1805 = vsub.f32 %v1773, %v1683
      %v1806 = vsub.f32 %v1774, %v1686
      %v1807 = vsub.f32 %v1775, %v1689
      %v1808 = vsub.f32 %v1776, %v1692
      %v1809 = vsub.f32 %v1777, %v1695
      %v1810 = vsub.f32 %v1778, %v1698
      %v1811 = vsub.f32 %v1779, %v1701
      %v1812 = vsub.f32 %v1780, %v1704
      %v1813 = vsub.f32 %v1781, %v1707
      %v1814 = vsub.f32 %v1782, %v1710
      %v1815 = vsub.f32 %v1783, %v1713
      %v1816 = vsub.f32 %v1784, %v1716
      %v1817 = vsub.f32 %v1785, %v1719
      %v1818 = vsub.f32 %v1786, %v1722
      %v1819 = vsub.f32 %v1787, %v1725
      %v1820 = vsub.f32 %v1788, %v1728
      %v1821 = vsub.f32 %v1789, %v1731
      %v1822 = vsub.f32 %v1790, %v1734
      %v1823 = vsub.f32 %v1791, %v1737
      %v1824 = vsub.f32 %v1792, %v1740
      %v1825 = vsub.f32 %v1793, %v1743
      %v1826 = vsub.f32 %v1794, %v1746
      %v1827 = vsub.f32 %v1795, %v1749
      %v1828 = vsub.f32 %v1796, %v1752
      %v1829 = vsub.f32 %v1797, %v1755
      %v1830 = vsub.f32 %v1798, %v1758
      %v1831 = vsub.f32 %v1799, %v1761
      %v1832 = vsub.f32 %v1800, %v1764
      %v1833 = vsub.f32 %v1801, %v1767
      %v1834 = vsub.f32 %v1802, %v1770
      %v1835 = vmul.f32 %v1803, 1.442695
      %v1836 = vpow.pop %v1835
      %v1837 = vmul.f32 %v1804, 1.442695
      %v1838 = vpow.pop %v1837
      %v1839 = vmul.f32 %v1805, 1.442695
      %v1840 = vpow.pop %v1839
      %v1841 = vmul.f32 %v1806, 1.442695
      %v1842 = vpow.pop %v1841
      %v1843 = vmul.f32 %v1807, 1.442695
      %v1844 = vpow.pop %v1843
      %v1845 = vmul.f32 %v1808, 1.442695
      %v1846 = vpow.pop %v1845
      %v1847 = vmul.f32 %v1809, 1.442695
      %v1848 = vpow.pop %v1847
      %v1849 = vmul.f32 %v1810, 1.442695
      %v1850 = vpow.pop %v1849
      %v1851 = vmul.f32 %v1811, 1.442695
      %v1852 = vpow.pop %v1851
      %v1853 = vmul.f32 %v1812, 1.442695
      %v1854 = vpow.pop %v1853
      %v1855 = vmul.f32 %v1813, 1.442695
      %v1856 = vpow.pop %v1855
      %v1857 = vmul.f32 %v1814, 1.442695
      %v1858 = vpow.pop %v1857
      %v1859 = vmul.f32 %v1815, 1.442695
      %v1860 = vpow.pop %v1859
      %v1861 = vmul.f32 %v1816, 1.442695
      %v1862 = vpow.pop %v1861
      %v1863 = vmul.f32 %v1817, 1.442695
      %v1864 = vpow.pop %v1863
      %v1865 = vmul.f32 %v1818, 1.442695
      %v1866 = vpow.pop %v1865
      %v1867 = vmul.f32 %v1819, 1.442695
      %v1868 = vpow.pop %v1867
      %v1869 = vmul.f32 %v1820, 1.442695
      %v1870 = vpow.pop %v1869
      %v1871 = vmul.f32 %v1821, 1.442695
      %v1872 = vpow.pop %v1871
      %v1873 = vmul.f32 %v1822, 1.442695
      %v1874 = vpow.pop %v1873
      %v1875 = vmul.f32 %v1823, 1.442695
      %v1876 = vpow.pop %v1875
      %v1877 = vmul.f32 %v1824, 1.442695
      %v1878 = vpow.pop %v1877
      %v1879 = vmul.f32 %v1825, 1.442695
      %v1880 = vpow.pop %v1879
      %v1881 = vmul.f32 %v1826, 1.442695
      %v1882 = vpow.pop %v1881
      %v1883 = vmul.f32 %v1827, 1.442695
      %v1884 = vpow.pop %v1883
      %v1885 = vmul.f32 %v1828, 1.442695
      %v1886 = vpow.pop %v1885
      %v1887 = vmul.f32 %v1829, 1.442695
      %v1888 = vpow.pop %v1887
      %v1889 = vmul.f32 %v1830, 1.442695
      %v1890 = vpow.pop %v1889
      %v1891 = vmul.f32 %v1831, 1.442695
      %v1892 = vpow.pop %v1891
      %v1893 = vmul.f32 %v1832, 1.442695
      %v1894 = vpow.pop %v1893
      %v1895 = vmul.f32 %v1833, 1.442695
      %v1896 = vpow.pop %v1895
      %v1897 = vmul.f32 %v1834, 1.442695
      %v1898 = vpow.pop %v1897
      %v1899 = vadd.f32 %v1836, 0.0001
      %v1900 = vadd.f32 %v1838, 0.0001
      %v1901 = vadd.f32 %v1840, 0.0001
      %v1902 = vadd.f32 %v1842, 0.0001
      %v1903 = vadd.f32 %v1844, 0.0001
      %v1904 = vadd.f32 %v1846, 0.0001
      %v1905 = vadd.f32 %v1848, 0.0001
      %v1906 = vadd.f32 %v1850, 0.0001
      %v1907 = vadd.f32 %v1852, 0.0001
      %v1908 = vadd.f32 %v1854, 0.0001
      %v1909 = vadd.f32 %v1856, 0.0001
      %v1910 = vadd.f32 %v1858, 0.0001
      %v1911 = vadd.f32 %v1860, 0.0001
      %v1912 = vadd.f32 %v1862, 0.0001
      %v1913 = vadd.f32 %v1864, 0.0001
      %v1914 = vadd.f32 %v1866, 0.0001
      %v1915 = vadd.f32 %v1868, 0.0001
      %v1916 = vadd.f32 %v1870, 0.0001
      %v1917 = vadd.f32 %v1872, 0.0001
      %v1918 = vadd.f32 %v1874, 0.0001
      %v1919 = vadd.f32 %v1876, 0.0001
      %v1920 = vadd.f32 %v1878, 0.0001
      %v1921 = vadd.f32 %v1880, 0.0001
      %v1922 = vadd.f32 %v1882, 0.0001
      %v1923 = vadd.f32 %v1884, 0.0001
      %v1924 = vadd.f32 %v1886, 0.0001
      %v1925 = vadd.f32 %v1888, 0.0001
      %v1926 = vadd.f32 %v1890, 0.0001
      %v1927 = vadd.f32 %v1892, 0.0001
      %v1928 = vadd.f32 %v1894, 0.0001
      %v1929 = vadd.f32 %v1896, 0.0001
      %v1930 = vadd.f32 %v1898, 0.0001
      %v1931 = vmul.f32 %v1899, 0.125
      %v1932 = vmul.f32 %v1900, 0.125
      %v1933 = vmul.f32 %v1901, 0.125
      %v1934 = vmul.f32 %v1902, 0.125
      %v1935 = vmul.f32 %v1903, 0.125
      %v1936 = vmul.f32 %v1904, 0.125
      %v1937 = vmul.f32 %v1905, 0.125
      %v1938 = vmul.f32 %v1906, 0.125
      %v1939 = vmul.f32 %v1907, 0.125
      %v1940 = vmul.f32 %v1908, 0.125
      %v1941 = vmul.f32 %v1909, 0.125
      %v1942 = vmul.f32 %v1910, 0.125
      %v1943 = vmul.f32 %v1911, 0.125
      %v1944 = vmul.f32 %v1912, 0.125
      %v1945 = vmul.f32 %v1913, 0.125
      %v1946 = vmul.f32 %v1914, 0.125
      %v1947 = vmul.f32 %v1915, 0.125
      %v1948 = vmul.f32 %v1916, 0.125
      %v1949 = vmul.f32 %v1917, 0.125
      %v1950 = vmul.f32 %v1918, 0.125
      %v1951 = vmul.f32 %v1919, 0.125
      %v1952 = vmul.f32 %v1920, 0.125
      %v1953 = vmul.f32 %v1921, 0.125
      %v1954 = vmul.f32 %v1922, 0.125
      %v1955 = vmul.f32 %v1923, 0.125
      %v1956 = vmul.f32 %v1924, 0.125
      %v1957 = vmul.f32 %v1925, 0.125
      %v1958 = vmul.f32 %v1926, 0.125
      %v1959 = vmul.f32 %v1927, 0.125
      %v1960 = vmul.f32 %v1928, 0.125
      %v1961 = vmul.f32 %v1929, 0.125
      %v1962 = vmul.f32 %v1930, 0.125
      %v1963 = vsel %vm1674, %v1548, -inf
      %1964 = vmax.xlane.f32.xlu0 %v1963
      %v1965 = vpop.xlane.xlu0 %1964
      %v1966 = vsel %vm1674, %v1551, -inf
      %1967 = vmax.xlane.f32.xlu0 %v1966
      %v1968 = vpop.xlane.xlu0 %1967
      %v1969 = vsel %vm1674, %v1556, -inf
      %1970 = vmax.xlane.f32.xlu0 %v1969
      %v1971 = vpop.xlane.xlu0 %1970
      %v1972 = vsel %vm1674, %v1559, -inf
      %1973 = vmax.xlane.f32.xlu0 %v1972
      %v1974 = vpop.xlane.xlu0 %1973
      %v1975 = vsel %vm1674, %v1564, -inf
      %1976 = vmax.xlane.f32.xlu0 %v1975
      %v1977 = vpop.xlane.xlu0 %1976
      %v1978 = vsel %vm1674, %v1567, -inf
      %1979 = vmax.xlane.f32.xlu0 %v1978
      %v1980 = vpop.xlane.xlu0 %1979
      %v1981 = vsel %vm1674, %v1572, -inf
      %1982 = vmax.xlane.f32.xlu0 %v1981
      %v1983 = vpop.xlane.xlu0 %1982
      %v1984 = vsel %vm1674, %v1575, -inf
      %1985 = vmax.xlane.f32.xlu0 %v1984
      %v1986 = vpop.xlane.xlu0 %1985
      %v1987 = vsel %vm1674, %v1580, -inf
      %1988 = vmax.xlane.f32.xlu0 %v1987
      %v1989 = vpop.xlane.xlu0 %1988
      %v1990 = vsel %vm1674, %v1583, -inf
      %1991 = vmax.xlane.f32.xlu0 %v1990
      %v1992 = vpop.xlane.xlu0 %1991
      %v1993 = vsel %vm1674, %v1588, -inf
      %1994 = vmax.xlane.f32.xlu0 %v1993
      %v1995 = vpop.xlane.xlu0 %1994
      %v1996 = vsel %vm1674, %v1591, -inf
      %1997 = vmax.xlane.f32.xlu0 %v1996
      %v1998 = vpop.xlane.xlu0 %1997
      %v1999 = vsel %vm1674, %v1596, -inf
      %2000 = vmax.xlane.f32.xlu0 %v1999
      %v2001 = vpop.xlane.xlu0 %2000
      %v2002 = vsel %vm1674, %v1599, -inf
      %2003 = vmax.xlane.f32.xlu0 %v2002
      %v2004 = vpop.xlane.xlu0 %2003
      %v2005 = vsel %vm1674, %v1604, -inf
      %2006 = vmax.xlane.f32.xlu0 %v2005
      %v2007 = vpop.xlane.xlu0 %2006
      %v2008 = vsel %vm1674, %v1607, -inf
      %2009 = vmax.xlane.f32.xlu0 %v2008
      %v2010 = vpop.xlane.xlu0 %2009
      %v2011 = vsel %vm1674, %v1612, -inf
      %2012 = vmax.xlane.f32.xlu0 %v2011
      %v2013 = vpop.xlane.xlu0 %2012
      %v2014 = vsel %vm1674, %v1615, -inf
      %2015 = vmax.xlane.f32.xlu0 %v2014
      %v2016 = vpop.xlane.xlu0 %2015
      %v2017 = vsel %vm1674, %v1620, -inf
      %2018 = vmax.xlane.f32.xlu0 %v2017
      %v2019 = vpop.xlane.xlu0 %2018
      %v2020 = vsel %vm1674, %v1623, -inf
      %2021 = vmax.xlane.f32.xlu0 %v2020
      %v2022 = vpop.xlane.xlu0 %2021
      %v2023 = vsel %vm1674, %v1628, -inf
      %2024 = vmax.xlane.f32.xlu0 %v2023
      %v2025 = vpop.xlane.xlu0 %2024
      %v2026 = vsel %vm1674, %v1631, -inf
      %2027 = vmax.xlane.f32.xlu0 %v2026
      %v2028 = vpop.xlane.xlu0 %2027
      %v2029 = vsel %vm1674, %v1636, -inf
      %2030 = vmax.xlane.f32.xlu0 %v2029
      %v2031 = vpop.xlane.xlu0 %2030
      %v2032 = vsel %vm1674, %v1639, -inf
      %2033 = vmax.xlane.f32.xlu0 %v2032
      %v2034 = vpop.xlane.xlu0 %2033
      %v2035 = vsel %vm1674, %v1644, -inf
      %2036 = vmax.xlane.f32.xlu0 %v2035
      %v2037 = vpop.xlane.xlu0 %2036
      %v2038 = vsel %vm1674, %v1647, -inf
      %2039 = vmax.xlane.f32.xlu0 %v2038
      %v2040 = vpop.xlane.xlu0 %2039
      %v2041 = vsel %vm1674, %v1652, -inf
      %2042 = vmax.xlane.f32.xlu0 %v2041
      %v2043 = vpop.xlane.xlu0 %2042
      %v2044 = vsel %vm1674, %v1655, -inf
      %2045 = vmax.xlane.f32.xlu0 %v2044
      %v2046 = vpop.xlane.xlu0 %2045
      %v2047 = vsel %vm1674, %v1660, -inf
      %2048 = vmax.xlane.f32.xlu0 %v2047
      %v2049 = vpop.xlane.xlu0 %2048
      %v2050 = vsel %vm1674, %v1663, -inf
      %2051 = vmax.xlane.f32.xlu0 %v2050
      %v2052 = vpop.xlane.xlu0 %2051
      %v2053 = vsel %vm1674, %v1668, -inf
      %2054 = vmax.xlane.f32.xlu0 %v2053
      %v2055 = vpop.xlane.xlu0 %2054
      %v2056 = vsel %vm1674, %v1671, -inf
      %2057 = vmax.xlane.f32.xlu0 %v2056
      %v2058 = vpop.xlane.xlu0 %2057
      %v2059 = vmax.f32 %v1965, %v1971
      %v2060 = vmax.f32 %v1968, %v1974
      %v2061 = vmax.f32 %v2059, %v1977
      %v2062 = vmax.f32 %v2060, %v1980
      %v2063 = vmax.f32 %v2061, %v1983
      %v2064 = vmax.f32 %v2062, %v1986
      %v2065 = vmax.f32 %v2063, %v1989
      %v2066 = vmax.f32 %v2064, %v1992
      %v2067 = vmax.f32 %v2065, %v1995
      %v2068 = vmax.f32 %v2066, %v1998
      %v2069 = vmax.f32 %v2067, %v2001
      %v2070 = vmax.f32 %v2068, %v2004
      %v2071 = vmax.f32 %v2069, %v2007
      %v2072 = vmax.f32 %v2070, %v2010
      %v2073 = vmax.f32 %v2071, %v2072
      %v2074 = vrot.slane %v2073, 4
      %v2075 = vmax.f32 %v2073, %v2074
      %v2076 = vrot.slane %v2075, 2
      %v2077 = vmax.f32 %v2075, %v2076
      %v2078 = vrot.slane %v2077, 1
      %v2079 = vmax.f32 %v2077, %v2078
      %v2080 = vmax.f32 %v2013, %v2019
      %v2081 = vmax.f32 %v2016, %v2022
      %v2082 = vmax.f32 %v2080, %v2025
      %v2083 = vmax.f32 %v2081, %v2028
      %v2084 = vmax.f32 %v2082, %v2031
      %v2085 = vmax.f32 %v2083, %v2034
      %v2086 = vmax.f32 %v2084, %v2037
      %v2087 = vmax.f32 %v2085, %v2040
      %v2088 = vmax.f32 %v2086, %v2043
      %v2089 = vmax.f32 %v2087, %v2046
      %v2090 = vmax.f32 %v2088, %v2049
      %v2091 = vmax.f32 %v2089, %v2052
      %v2092 = vmax.f32 %v2090, %v2055
      %v2093 = vmax.f32 %v2091, %v2058
      %v2094 = vmax.f32 %v2092, %v2093
      %v2095 = vrot.slane %v2094, 4
      %v2096 = vmax.f32 %v2094, %v2095
      %v2097 = vrot.slane %v2096, 2
      %v2098 = vmax.f32 %v2096, %v2097
      %v2099 = vrot.slane %v2098, 1
      %v2100 = vmax.f32 %v2098, %v2099
      %v2101 = vsub.f32 %v1548, %v1152
      %v2102 = vsub.f32 %v1551, %v1153
      %v2103 = vsub.f32 %v1556, %v1154
      %v2104 = vsub.f32 %v1559, %v1155
      %v2105 = vsub.f32 %v1564, %v1156
      %v2106 = vsub.f32 %v1567, %v1157
      %v2107 = vsub.f32 %v1572, %v1158
      %v2108 = vsub.f32 %v1575, %v1159
      %v2109 = vsub.f32 %v1580, %v1160
      %v2110 = vsub.f32 %v1583, %v1161
      %v2111 = vsub.f32 %v1588, %v1162
      %v2112 = vsub.f32 %v1591, %v1163
      %v2113 = vsub.f32 %v1596, %v1164
      %v2114 = vsub.f32 %v1599, %v1165
      %v2115 = vsub.f32 %v1604, %v1166
      %v2116 = vsub.f32 %v1607, %v1167
      %v2117 = vsub.f32 %v1612, %v1168
      %v2118 = vsub.f32 %v1615, %v1169
      %v2119 = vsub.f32 %v1620, %v1170
      %v2120 = vsub.f32 %v1623, %v1171
      %v2121 = vsub.f32 %v1628, %v1172
      %v2122 = vsub.f32 %v1631, %v1173
      %v2123 = vsub.f32 %v1636, %v1174
      %v2124 = vsub.f32 %v1639, %v1175
      %v2125 = vsub.f32 %v1644, %v1176
      %v2126 = vsub.f32 %v1647, %v1177
      %v2127 = vsub.f32 %v1652, %v1178
      %v2128 = vsub.f32 %v1655, %v1179
      %v2129 = vsub.f32 %v1660, %v1180
      %v2130 = vsub.f32 %v1663, %v1181
      %v2131 = vsub.f32 %v1668, %v1182
      %v2132 = vsub.f32 %v1671, %v1183
      %v2133 = vsub.f32 %v2101, %v2079
      %v2134 = vsub.f32 %v2102, %v2079
      %v2135 = vsub.f32 %v2103, %v2079
      %v2136 = vsub.f32 %v2104, %v2079
      %v2137 = vsub.f32 %v2105, %v2079
      %v2138 = vsub.f32 %v2106, %v2079
      %v2139 = vsub.f32 %v2107, %v2079
      %v2140 = vsub.f32 %v2108, %v2079
      %v2141 = vsub.f32 %v2109, %v2079
      %v2142 = vsub.f32 %v2110, %v2079
      %v2143 = vsub.f32 %v2111, %v2079
      %v2144 = vsub.f32 %v2112, %v2079
      %v2145 = vsub.f32 %v2113, %v2079
      %v2146 = vsub.f32 %v2114, %v2079
      %v2147 = vsub.f32 %v2115, %v2079
      %v2148 = vsub.f32 %v2116, %v2079
      %v2149 = vsub.f32 %v2117, %v2100
      %v2150 = vsub.f32 %v2118, %v2100
      %v2151 = vsub.f32 %v2119, %v2100
      %v2152 = vsub.f32 %v2120, %v2100
      %v2153 = vsub.f32 %v2121, %v2100
      %v2154 = vsub.f32 %v2122, %v2100
      %v2155 = vsub.f32 %v2123, %v2100
      %v2156 = vsub.f32 %v2124, %v2100
      %v2157 = vsub.f32 %v2125, %v2100
      %v2158 = vsub.f32 %v2126, %v2100
      %v2159 = vsub.f32 %v2127, %v2100
      %v2160 = vsub.f32 %v2128, %v2100
      %v2161 = vsub.f32 %v2129, %v2100
      %v2162 = vsub.f32 %v2130, %v2100
      %v2163 = vsub.f32 %v2131, %v2100
      %v2164 = vsub.f32 %v2132, %v2100
      %v2165 = vmul.f32 %v2133, 1.442695
      %v2166 = vpow.pop %v2165
      %v2167 = vmul.f32 %v2134, 1.442695
      %v2168 = vpow.pop %v2167
      %v2169 = vmul.f32 %v2135, 1.442695
      %v2170 = vpow.pop %v2169
      %v2171 = vmul.f32 %v2136, 1.442695
      %v2172 = vpow.pop %v2171
      %v2173 = vmul.f32 %v2137, 1.442695
      %v2174 = vpow.pop %v2173
      %v2175 = vmul.f32 %v2138, 1.442695
      %v2176 = vpow.pop %v2175
      %v2177 = vmul.f32 %v2139, 1.442695
      %v2178 = vpow.pop %v2177
      %v2179 = vmul.f32 %v2140, 1.442695
      %v2180 = vpow.pop %v2179
      %v2181 = vmul.f32 %v2141, 1.442695
      %v2182 = vpow.pop %v2181
      %v2183 = vmul.f32 %v2142, 1.442695
      %v2184 = vpow.pop %v2183
      %v2185 = vmul.f32 %v2143, 1.442695
      %v2186 = vpow.pop %v2185
      %v2187 = vmul.f32 %v2144, 1.442695
      %v2188 = vpow.pop %v2187
      %v2189 = vmul.f32 %v2145, 1.442695
      %v2190 = vpow.pop %v2189
      %v2191 = vmul.f32 %v2146, 1.442695
      %v2192 = vpow.pop %v2191
      %v2193 = vmul.f32 %v2147, 1.442695
      %v2194 = vpow.pop %v2193
      %v2195 = vmul.f32 %v2148, 1.442695
      %v2196 = vpow.pop %v2195
      %v2197 = vmul.f32 %v2149, 1.442695
      %v2198 = vpow.pop %v2197
      %v2199 = vmul.f32 %v2150, 1.442695
      %v2200 = vpow.pop %v2199
      %v2201 = vmul.f32 %v2151, 1.442695
      %v2202 = vpow.pop %v2201
      %v2203 = vmul.f32 %v2152, 1.442695
      %v2204 = vpow.pop %v2203
      %v2205 = vmul.f32 %v2153, 1.442695
      %v2206 = vpow.pop %v2205
      %v2207 = vmul.f32 %v2154, 1.442695
      %v2208 = vpow.pop %v2207
      %v2209 = vmul.f32 %v2155, 1.442695
      %v2210 = vpow.pop %v2209
      %v2211 = vmul.f32 %v2156, 1.442695
      %v2212 = vpow.pop %v2211
      %v2213 = vmul.f32 %v2157, 1.442695
      %v2214 = vpow.pop %v2213
      %v2215 = vmul.f32 %v2158, 1.442695
      %v2216 = vpow.pop %v2215
      %v2217 = vmul.f32 %v2159, 1.442695
      %v2218 = vpow.pop %v2217
      %v2219 = vmul.f32 %v2160, 1.442695
      %v2220 = vpow.pop %v2219
      %v2221 = vmul.f32 %v2161, 1.442695
      %v2222 = vpow.pop %v2221
      %v2223 = vmul.f32 %v2162, 1.442695
      %v2224 = vpow.pop %v2223
      %v2225 = vmul.f32 %v2163, 1.442695
      %v2226 = vpow.pop %v2225
      %v2227 = vmul.f32 %v2164, 1.442695
      %v2228 = vpow.pop %v2227
      %v2229 = vadd.f32 %v2166, 0.0001
      %v2230 = vadd.f32 %v2168, 0.0001
      %v2231 = vadd.f32 %v2170, 0.0001
      %v2232 = vadd.f32 %v2172, 0.0001
      %v2233 = vadd.f32 %v2174, 0.0001
      %v2234 = vadd.f32 %v2176, 0.0001
      %v2235 = vadd.f32 %v2178, 0.0001
      %v2236 = vadd.f32 %v2180, 0.0001
      %v2237 = vadd.f32 %v2182, 0.0001
      %v2238 = vadd.f32 %v2184, 0.0001
      %v2239 = vadd.f32 %v2186, 0.0001
      %v2240 = vadd.f32 %v2188, 0.0001
      %v2241 = vadd.f32 %v2190, 0.0001
      %v2242 = vadd.f32 %v2192, 0.0001
      %v2243 = vadd.f32 %v2194, 0.0001
      %v2244 = vadd.f32 %v2196, 0.0001
      %v2245 = vadd.f32 %v2198, 0.0001
      %v2246 = vadd.f32 %v2200, 0.0001
      %v2247 = vadd.f32 %v2202, 0.0001
      %v2248 = vadd.f32 %v2204, 0.0001
      %v2249 = vadd.f32 %v2206, 0.0001
      %v2250 = vadd.f32 %v2208, 0.0001
      %v2251 = vadd.f32 %v2210, 0.0001
      %v2252 = vadd.f32 %v2212, 0.0001
      %v2253 = vadd.f32 %v2214, 0.0001
      %v2254 = vadd.f32 %v2216, 0.0001
      %v2255 = vadd.f32 %v2218, 0.0001
      %v2256 = vadd.f32 %v2220, 0.0001
      %v2257 = vadd.f32 %v2222, 0.0001
      %v2258 = vadd.f32 %v2224, 0.0001
      %v2259 = vadd.f32 %v2226, 0.0001
      %v2260 = vadd.f32 %v2228, 0.0001
      %v2261 = vmul.f32 %v2229, 0.125
      %v2262 = vmul.f32 %v2230, 0.125
      %v2263 = vmul.f32 %v2231, 0.125
      %v2264 = vmul.f32 %v2232, 0.125
      %v2265 = vmul.f32 %v2233, 0.125
      %v2266 = vmul.f32 %v2234, 0.125
      %v2267 = vmul.f32 %v2235, 0.125
      %v2268 = vmul.f32 %v2236, 0.125
      %v2269 = vmul.f32 %v2237, 0.125
      %v2270 = vmul.f32 %v2238, 0.125
      %v2271 = vmul.f32 %v2239, 0.125
      %v2272 = vmul.f32 %v2240, 0.125
      %v2273 = vmul.f32 %v2241, 0.125
      %v2274 = vmul.f32 %v2242, 0.125
      %v2275 = vmul.f32 %v2243, 0.125
      %v2276 = vmul.f32 %v2244, 0.125
      %v2277 = vmul.f32 %v2245, 0.125
      %v2278 = vmul.f32 %v2246, 0.125
      %v2279 = vmul.f32 %v2247, 0.125
      %v2280 = vmul.f32 %v2248, 0.125
      %v2281 = vmul.f32 %v2249, 0.125
      %v2282 = vmul.f32 %v2250, 0.125
      %v2283 = vmul.f32 %v2251, 0.125
      %v2284 = vmul.f32 %v2252, 0.125
      %v2285 = vmul.f32 %v2253, 0.125
      %v2286 = vmul.f32 %v2254, 0.125
      %v2287 = vmul.f32 %v2255, 0.125
      %v2288 = vmul.f32 %v2256, 0.125
      %v2289 = vmul.f32 %v2257, 0.125
      %v2290 = vmul.f32 %v2258, 0.125
      %v2291 = vmul.f32 %v2259, 0.125
      %v2292 = vmul.f32 %v2260, 0.125
      %v2293 = vpack.c.bf16 %v1932, %v1931
      %v2294 = vpack.c.bf16 %v1934, %v1933
      %v2295 = vpack.c.bf16 %v1936, %v1935
      %v2296 = vpack.c.bf16 %v1938, %v1937
      %v2297 = vpack.c.bf16 %v1940, %v1939
      %v2298 = vpack.c.bf16 %v1942, %v1941
      %v2299 = vpack.c.bf16 %v1944, %v1943
      %v2300 = vpack.c.bf16 %v1946, %v1945
      %v2301 = vpack.c.bf16 %v1948, %v1947
      %v2302 = vpack.c.bf16 %v1950, %v1949
      %v2303 = vpack.c.bf16 %v1952, %v1951
      %v2304 = vpack.c.bf16 %v1954, %v1953
      %v2305 = vpack.c.bf16 %v1956, %v1955
      %v2306 = vpack.c.bf16 %v1958, %v1957
      %v2307 = vpack.c.bf16 %v1960, %v1959
      %v2308 = vpack.c.bf16 %v1962, %v1961
      %v2309 = vpack.c.bf16 %v2262, %v2261
      %v2310 = vpack.c.bf16 %v2264, %v2263
      %v2311 = vpack.c.bf16 %v2266, %v2265
      %v2312 = vpack.c.bf16 %v2268, %v2267
      %v2313 = vpack.c.bf16 %v2270, %v2269
      %v2314 = vpack.c.bf16 %v2272, %v2271
      %v2315 = vpack.c.bf16 %v2274, %v2273
      %v2316 = vpack.c.bf16 %v2276, %v2275
      %v2317 = vpack.c.bf16 %v2278, %v2277
      %v2318 = vpack.c.bf16 %v2280, %v2279
      %v2319 = vpack.c.bf16 %v2282, %v2281
      %v2320 = vpack.c.bf16 %v2284, %v2283
      %v2321 = vpack.c.bf16 %v2286, %v2285
      %v2322 = vpack.c.bf16 %v2288, %v2287
      %v2323 = vpack.c.bf16 %v2290, %v2289
      %v2324 = vpack.c.bf16 %v2292, %v2291
      %v2325 = vpack.c.bf16 %v832, %v831
      %v2326 = vpack.c.bf16 %v834, %v833
      %v2327 = vpack.c.bf16 %v836, %v835
      %v2328 = vpack.c.bf16 %v838, %v837
      %v2329 = vpack.c.bf16 %v840, %v839
      %v2330 = vpack.c.bf16 %v842, %v841
      %v2331 = vpack.c.bf16 %v844, %v843
      %v2332 = vpack.c.bf16 %v846, %v845
      %v2333 = vpack.c.bf16 %v848, %v847
      %v2334 = vpack.c.bf16 %v850, %v849
      %v2335 = vpack.c.bf16 %v852, %v851
      %v2336 = vpack.c.bf16 %v854, %v853
      %v2337 = vpack.c.bf16 %v856, %v855
      %v2338 = vpack.c.bf16 %v858, %v857
      %v2339 = vpack.c.bf16 %v860, %v859
      %v2340 = vpack.c.bf16 %v862, %v861
      %v2343 = vsel %vm895, %v2325, 1065369472
      %v2346 = vsel %vm895, %v2326, 1065369472
      %v2349 = vsel %vm895, %v2327, 1065369472
      %v2352 = vsel %vm895, %v2328, 1065369472
      %v2355 = vsel %vm895, %v2329, 1065369472
      %v2358 = vsel %vm895, %v2330, 1065369472
      %v2361 = vsel %vm895, %v2331, 1065369472
      %v2364 = vsel %vm895, %v2332, 1065369472
      %v2367 = vsel %vm895, %v2333, 1065369472
      %v2370 = vsel %vm895, %v2334, 1065369472
      %v2373 = vsel %vm895, %v2335, 1065369472
      %v2376 = vsel %vm895, %v2336, 1065369472
      %v2379 = vsel %vm895, %v2337, 1065369472
      %v2382 = vsel %vm895, %v2338, 1065369472
      %v2385 = vsel %vm895, %v2339, 1065369472
      %v2388 = vsel %vm895, %v2340, 1065369472
      %2390 = vxpose.xlu0.c.b16.start [1/8] %v2309, 128
      %2391 = vxpose.xlu0.c.b16.cont [2/8] %v2310, 128
      %2392 = vxpose.xlu0.c.b16.cont [3/8] %v2311, 128
      %2393 = vxpose.xlu0.c.b16.cont [4/8] %v2312, 128
      %2394 = vxpose.xlu0.c.b16.cont [5/8] %v2313, 128
      %2395 = vxpose.xlu0.c.b16.cont [6/8] %v2314, 128
      %2396 = vxpose.xlu0.c.b16.cont [7/8] %v2315, 128
      %2397 = vxpose.xlu0.c.b16.end [8/8] %v2316, 128
      %v2398 = vpop.trf.xlu0
      %v2399 = vpop.trf.xlu0
      %v2400 = vpop.trf.xlu0
      %v2401 = vpop.trf.xlu0
      %v2402 = vpop.trf.xlu0
      %v2403 = vpop.trf.xlu0
      %v2404 = vpop.trf.xlu0
      %v2405 = vpop.trf.xlu0
      %2406 = vmatprep.subr.bf16.mxu0 0
      %2407 = vmatpush1.bf16.msra.mxu0 %v2343
      %2408 = vmatprep.subr.bf16.mxu0 0
      %2409 = vmatpush1.bf16.msra.mxu0 %v2346
      %2410 = vmatprep.subr.bf16.mxu0 0
      %2411 = vmatpush1.bf16.msra.mxu0 %v2349
      %2412 = vmatprep.subr.bf16.mxu0 0
      %2413 = vmatpush1.bf16.msra.mxu0 %v2352
      %2414 = vmatprep.subr.bf16.mxu0 0
      %2415 = vmatpush1.bf16.msra.mxu0 %v2355
      %2416 = vmatprep.subr.bf16.mxu0 0
      %2417 = vmatpush1.bf16.msra.mxu0 %v2358
      %2418 = vmatprep.subr.bf16.mxu0 0
      %2419 = vmatpush1.bf16.msra.mxu0 %v2361
      %2420 = vmatprep.subr.bf16.mxu0 0
      %2421 = vmatpush1.bf16.msra.mxu0 %v2364
      %2422 = vmatprep.subr.bf16.mxu0 0
      %2423 = vmatpush1.bf16.msra.mxu0 0
      %2424 = vmatprep.subr.bf16.mxu0 0
      %2425 = vmatpush1.bf16.msra.mxu0 0
      %2426 = vmatprep.subr.bf16.mxu0 0
      %2427 = vmatpush1.bf16.msra.mxu0 0
      %2428 = vmatprep.subr.bf16.mxu0 0
      %2429 = vmatpush1.bf16.msra.mxu0 0
      %2430 = vmatprep.subr.bf16.mxu0 0
      %2431 = vmatpush1.bf16.msra.mxu0 0
      %2432 = vmatprep.subr.bf16.mxu0 0
      %2433 = vmatpush1.bf16.msra.mxu0 0
      %2434 = vmatprep.subr.bf16.mxu0 0
      %2435 = vmatpush1.bf16.msra.mxu0 0
      %2436 = vmatprep.subr.bf16.mxu0 0
      %2437 = vmatpush1.bf16.msra.mxu0 0
      %2438 = vmatprep.mubr.bf16.mxu0 0
      %2439 = vmatmul.mubr.bf16.gmra.mrb[0].mxu0 %v2398
      %v2440 = vpop.f32.mrb[0].mxu0
      %v2441 = vadd.f32 0.0, %v2440
      %v2442 = vpop.f32.mrb[0].mxu0
      %v2443 = vpop.f32.mrb[0].mxu0
      %v2444 = vadd.f32 0.0, %v2443
      %v2445 = vpop.f32.mrb[0].mxu0
      %2446 = vmatprep.mubr.bf16.mxu0 0
      %2447 = vmatmul.mubr.bf16.gmra.mrb[0].mxu0 %v2399
      %v2448 = vpop.f32.mrb[0].mxu0
      %v2449 = vadd.f32 0.0, %v2448
      %v2450 = vpop.f32.mrb[0].mxu0
      %v2451 = vpop.f32.mrb[0].mxu0
      %v2452 = vadd.f32 0.0, %v2451
      %v2453 = vpop.f32.mrb[0].mxu0
      %2454 = vmatprep.mubr.bf16.mxu0 0
      %2455 = vmatmul.mubr.bf16.gmra.mrb[0].mxu0 %v2400
      %v2456 = vpop.f32.mrb[0].mxu0
      %v2457 = vadd.f32 0.0, %v2456
      %v2458 = vpop.f32.mrb[0].mxu0
      %v2459 = vpop.f32.mrb[0].mxu0
      %v2460 = vadd.f32 0.0, %v2459
      %v2461 = vpop.f32.mrb[0].mxu0
      %2462 = vmatprep.mubr.bf16.mxu0 0
      %2463 = vmatmul.mubr.bf16.gmra.mrb[0].mxu0 %v2401
      %v2464 = vpop.f32.mrb[0].mxu0
      %v2465 = vadd.f32 0.0, %v2464
      %v2466 = vpop.f32.mrb[0].mxu0
      %v2467 = vpop.f32.mrb[0].mxu0
      %v2468 = vadd.f32 0.0, %v2467
      %v2469 = vpop.f32.mrb[0].mxu0
      %2470 = vdwg.mxu0
      %v2471 = vpack.c.bf16 %v2444, %v2441
      %v2472 = vpack.c.bf16 %v2452, %v2449
      %v2473 = vpack.c.bf16 %v2460, %v2457
      %v2474 = vpack.c.bf16 %v2468, %v2465
      %v2476 = vsel %vm1674, %v2293, 0
      %v2479 = vsel %vm1674, %v2294, 0
      %v2482 = vsel %vm1674, %v2295, 0
      %v2485 = vsel %vm1674, %v2296, 0
      %v2488 = vsel %vm1674, %v2297, 0
      %v2491 = vsel %vm1674, %v2298, 0
      %v2494 = vsel %vm1674, %v2299, 0
      %v2497 = vsel %vm1674, %v2300, 0
      %2499 = vmatprep.subr.bf16.mxu0 0
      %2500 = vmatpush1.bf16.msra.mxu0 %v2471
      %2501 = vmatprep.subr.bf16.mxu0 0
      %2502 = vmatpush1.bf16.msra.mxu0 %v2472
      %2503 = vmatprep.subr.bf16.mxu0 0
      %2504 = vmatpush1.bf16.msra.mxu0 %v2473
      %2505 = vmatprep.subr.bf16.mxu0 0
      %2506 = vmatpush1.bf16.msra.mxu0 %v2474
      %2507 = vmatprep.subr.bf16.mxu0 0
      %2508 = vmatpush1.bf16.msra.mxu0 0
      %2509 = vmatprep.subr.bf16.mxu0 0
      %2510 = vmatpush1.bf16.msra.mxu0 0
      %2511 = vmatprep.subr.bf16.mxu0 0
      %2512 = vmatpush1.bf16.msra.mxu0 0
      %2513 = vmatprep.subr.bf16.mxu0 0
      %2514 = vmatpush1.bf16.msra.mxu0 0
      %2515 = vmatprep.subr.bf16.mxu0 0
      %2516 = vmatpush1.bf16.msra.mxu0 0
      %2517 = vmatprep.subr.bf16.mxu0 0
      %2518 = vmatpush1.bf16.msra.mxu0 0
      %2519 = vmatprep.subr.bf16.mxu0 0
      %2520 = vmatpush1.bf16.msra.mxu0 0
      %2521 = vmatprep.subr.bf16.mxu0 0
      %2522 = vmatpush1.bf16.msra.mxu0 0
      %2523 = vmatprep.subr.bf16.mxu0 0
      %2524 = vmatpush1.bf16.msra.mxu0 0
      %2525 = vmatprep.subr.bf16.mxu0 0
      %2526 = vmatpush1.bf16.msra.mxu0 0
      %2527 = vmatprep.subr.bf16.mxu0 0
      %2528 = vmatpush1.bf16.msra.mxu0 0
      %2529 = vmatprep.subr.bf16.mxu0 0
      %2530 = vmatpush1.bf16.msra.mxu0 0
      %2531 = vmatprep.mubr.bf16.mxu0 0
      %2532 = vmatmul.mubr.bf16.gmra.mrb[0].mxu0 %v2476
      %v2533 = vpop.f32.mrb[0].mxu0
      %v2534 = vadd.f32 0.0, %v2533
      %v2535 = vpop.f32.mrb[0].mxu0
      %v2536 = vpop.f32.mrb[0].mxu0
      %v2537 = vadd.f32 0.0, %v2536
      %v2538 = vpop.f32.mrb[0].mxu0
      %2539 = vmatprep.mubr.bf16.mxu0 0
      %2540 = vmatmul.mubr.bf16.gmra.mrb[0].mxu0 %v2479
      %v2541 = vpop.f32.mrb[0].mxu0
      %v2542 = vadd.f32 0.0, %v2541
      %v2543 = vpop.f32.mrb[0].mxu0
      %v2544 = vpop.f32.mrb[0].mxu0
      %v2545 = vadd.f32 0.0, %v2544
      %v2546 = vpop.f32.mrb[0].mxu0
      %2547 = vmatprep.mubr.bf16.mxu0 0
      %2548 = vmatmul.mubr.bf16.gmra.mrb[0].mxu0 %v2482
      %v2549 = vpop.f32.mrb[0].mxu0
      %v2550 = vadd.f32 0.0, %v2549
      %v2551 = vpop.f32.mrb[0].mxu0
      %v2552 = vpop.f32.mrb[0].mxu0
      %v2553 = vadd.f32 0.0, %v2552
      %v2554 = vpop.f32.mrb[0].mxu0
      %2555 = vmatprep.mubr.bf16.mxu0 0
      %2556 = vmatmul.mubr.bf16.gmra.mrb[0].mxu0 %v2485
      %v2557 = vpop.f32.mrb[0].mxu0
      %v2558 = vadd.f32 0.0, %v2557
      %v2559 = vpop.f32.mrb[0].mxu0
      %v2560 = vpop.f32.mrb[0].mxu0
      %v2561 = vadd.f32 0.0, %v2560
      %v2562 = vpop.f32.mrb[0].mxu0
      %2563 = vmatprep.mubr.bf16.mxu0 0
      %2564 = vmatmul.mubr.bf16.gmra.mrb[0].mxu0 %v2488
      %v2565 = vpop.f32.mrb[0].mxu0
      %v2566 = vadd.f32 0.0, %v2565
      %v2567 = vpop.f32.mrb[0].mxu0
      %v2568 = vpop.f32.mrb[0].mxu0
      %v2569 = vadd.f32 0.0, %v2568
      %v2570 = vpop.f32.mrb[0].mxu0
      %2571 = vmatprep.mubr.bf16.mxu0 0
      %2572 = vmatmul.mubr.bf16.gmra.mrb[0].mxu0 %v2491
      %v2573 = vpop.f32.mrb[0].mxu0
      %v2574 = vadd.f32 0.0, %v2573
      %v2575 = vpop.f32.mrb[0].mxu0
      %v2576 = vpop.f32.mrb[0].mxu0
      %v2577 = vadd.f32 0.0, %v2576
      %v2578 = vpop.f32.mrb[0].mxu0
      %2579 = vmatprep.mubr.bf16.mxu0 0
      %2580 = vmatmul.mubr.bf16.gmra.mrb[0].mxu0 %v2494
      %v2581 = vpop.f32.mrb[0].mxu0
      %v2582 = vadd.f32 0.0, %v2581
      %v2583 = vpop.f32.mrb[0].mxu0
      %v2584 = vpop.f32.mrb[0].mxu0
      %v2585 = vadd.f32 0.0, %v2584
      %v2586 = vpop.f32.mrb[0].mxu0
      %2587 = vmatprep.mubr.bf16.mxu0 0
      %2588 = vmatmul.mubr.bf16.gmra.mrb[0].mxu0 %v2497
      %v2589 = vpop.f32.mrb[0].mxu0
      %v2590 = vadd.f32 0.0, %v2589
      %v2591 = vpop.f32.mrb[0].mxu0
      %v2592 = vpop.f32.mrb[0].mxu0
      %v2593 = vadd.f32 0.0, %v2592
      %v2594 = vpop.f32.mrb[0].mxu0
      %2595 = vdwg.mxu0
      %v2596 = vrcp.pop %v2534
      %v2597 = vrcp.pop %v2537
      %v2598 = vrcp.pop %v2542
      %v2599 = vrcp.pop %v2545
      %v2600 = vrcp.pop %v2550
      %v2601 = vrcp.pop %v2553
      %v2602 = vrcp.pop %v2558
      %v2603 = vrcp.pop %v2561
      %v2604 = vrcp.pop %v2566
      %v2605 = vrcp.pop %v2569
      %v2606 = vrcp.pop %v2574
      %v2607 = vrcp.pop %v2577
      %v2608 = vrcp.pop %v2582
      %v2609 = vrcp.pop %v2585
      %v2610 = vrcp.pop %v2590
      %v2611 = vrcp.pop %v2593
      %2613 = vset.pattern.permute.xlu0 32
      %2614 = vperm.xlu0 %2613, %v2596
      %v2615 = vpop.permute.xlu0 %2614
      %2618 = vset.pattern.permute.xlu0 32
      %2619 = vperm.xlu0 %2618, %v2597
      %v2620 = vpop.permute.xlu0 %2619
      %2623 = vset.pattern.permute.xlu0 32
      %2624 = vperm.xlu0 %2623, %v2598
      %v2625 = vpop.permute.xlu0 %2624
      %2628 = vset.pattern.permute.xlu0 32
      %2629 = vperm.xlu0 %2628, %v2599
      %v2630 = vpop.permute.xlu0 %2629
      %2633 = vset.pattern.permute.xlu0 32
      %2634 = vperm.xlu0 %2633, %v2600
      %v2635 = vpop.permute.xlu0 %2634
      %2638 = vset.pattern.permute.xlu0 32
      %2639 = vperm.xlu0 %2638, %v2601
      %v2640 = vpop.permute.xlu0 %2639
      %2643 = vset.pattern.permute.xlu0 32
      %2644 = vperm.xlu0 %2643, %v2602
      %v2645 = vpop.permute.xlu0 %2644
      %2648 = vset.pattern.permute.xlu0 32
      %2649 = vperm.xlu0 %2648, %v2603
      %v2650 = vpop.permute.xlu0 %2649
      %2653 = vset.pattern.permute.xlu0 32
      %2654 = vperm.xlu0 %2653, %v2604
      %v2655 = vpop.permute.xlu0 %2654
      %2658 = vset.pattern.permute.xlu0 32
      %2659 = vperm.xlu0 %2658, %v2605
      %v2660 = vpop.permute.xlu0 %2659
      %2663 = vset.pattern.permute.xlu0 32
      %2664 = vperm.xlu0 %2663, %v2606
      %v2665 = vpop.permute.xlu0 %2664
      %2668 = vset.pattern.permute.xlu0 32
      %2669 = vperm.xlu0 %2668, %v2607
      %v2670 = vpop.permute.xlu0 %2669
      %2673 = vset.pattern.permute.xlu0 32
      %2674 = vperm.xlu0 %2673, %v2608
      %v2675 = vpop.permute.xlu0 %2674
      %2678 = vset.pattern.permute.xlu0 32
      %2679 = vperm.xlu0 %2678, %v2609
      %v2680 = vpop.permute.xlu0 %2679
      %2683 = vset.pattern.permute.xlu0 32
      %2684 = vperm.xlu0 %2683, %v2610
      %v2685 = vpop.permute.xlu0 %2684
      %2688 = vset.pattern.permute.xlu0 32
      %2689 = vperm.xlu0 %2688, %v2611
      %v2690 = vpop.permute.xlu0 %2689
      %v2692 = vmul.f32 %v2534, %v2615
      %v2693 = vmul.f32 %v2537, %v2620
      %v2694 = vmul.f32 %v2542, %v2625
      %v2695 = vmul.f32 %v2545, %v2630
      %v2696 = vmul.f32 %v2550, %v2635
      %v2697 = vmul.f32 %v2553, %v2640
      %v2698 = vmul.f32 %v2558, %v2645
      %v2699 = vmul.f32 %v2561, %v2650
      %v2700 = vmul.f32 %v2566, %v2655
      %v2701 = vmul.f32 %v2569, %v2660
      %v2702 = vmul.f32 %v2574, %v2665
      %v2703 = vmul.f32 %v2577, %v2670
      %v2704 = vmul.f32 %v2582, %v2675
      %v2705 = vmul.f32 %v2585, %v2680
      %v2706 = vmul.f32 %v2590, %v2685
      %v2707 = vmul.f32 %v2593, %v2690
      %2708 = vst.msk [vmem:[%s284] sm:$0xff] %vm895, %v2692
      %2709 = vst.msk [vmem:[%s284 + $0x8] sm:$0xff] %vm895, %v2693
      %2710 = vst.msk [vmem:[%s284 + $0x10] sm:$0xff] %vm895, %v2694
      %2711 = vst.msk [vmem:[%s284 + $0x18] sm:$0xff] %vm895, %v2695
      %2712 = vst.msk [vmem:[%s284 + $0x20] sm:$0xff] %vm895, %v2696
      %2713 = vst.msk [vmem:[%s284 + $0x28] sm:$0xff] %vm895, %v2697
      %2714 = vst.msk [vmem:[%s284 + $0x30] sm:$0xff] %vm895, %v2698
      %2715 = vst.msk [vmem:[%s284 + $0x38] sm:$0xff] %vm895, %v2699
      %2716 = vst.msk [vmem:[%s284 + $0x40] sm:$0xff] %vm895, %v2700
      %2717 = vst.msk [vmem:[%s284 + $0x48] sm:$0xff] %vm895, %v2701
      %2718 = vst.msk [vmem:[%s284 + $0x50] sm:$0xff] %vm895, %v2702
      %2719 = vst.msk [vmem:[%s284 + $0x58] sm:$0xff] %vm895, %v2703
      %2720 = vst.msk [vmem:[%s284 + $0x60] sm:$0xff] %vm895, %v2704
      %2721 = vst.msk [vmem:[%s284 + $0x68] sm:$0xff] %vm895, %v2705
      %2722 = vst.msk [vmem:[%s284 + $0x70] sm:$0xff] %vm895, %v2706
      %2723 = vst.msk [vmem:[%s284 + $0x78] sm:$0xff] %vm895, %v2707
      %2724 = vxpose.xlu0.c.b16.start [1/8] %v2317, 128
      %2725 = vxpose.xlu0.c.b16.cont [2/8] %v2318, 128
      %2726 = vxpose.xlu0.c.b16.cont [3/8] %v2319, 128
      %2727 = vxpose.xlu0.c.b16.cont [4/8] %v2320, 128
      %2728 = vxpose.xlu0.c.b16.cont [5/8] %v2321, 128
      %2729 = vxpose.xlu0.c.b16.cont [6/8] %v2322, 128
      %2730 = vxpose.xlu0.c.b16.cont [7/8] %v2323, 128
      %2731 = vxpose.xlu0.c.b16.end [8/8] %v2324, 128
      %v2732 = vpop.trf.xlu0
      %v2733 = vpop.trf.xlu0
      %v2734 = vpop.trf.xlu0
      %v2735 = vpop.trf.xlu0
      %v2736 = vpop.trf.xlu0
      %v2737 = vpop.trf.xlu0
      %v2738 = vpop.trf.xlu0
      %v2739 = vpop.trf.xlu0
      %2740 = vmatprep.subr.bf16.mxu0 0
      %2741 = vmatpush1.bf16.msra.mxu0 %v2367
      %2742 = vmatprep.subr.bf16.mxu0 0
      %2743 = vmatpush1.bf16.msra.mxu0 %v2370
      %2744 = vmatprep.subr.bf16.mxu0 0
      %2745 = vmatpush1.bf16.msra.mxu0 %v2373
      %2746 = vmatprep.subr.bf16.mxu0 0
      %2747 = vmatpush1.bf16.msra.mxu0 %v2376
      %2748 = vmatprep.subr.bf16.mxu0 0
      %2749 = vmatpush1.bf16.msra.mxu0 %v2379
      %2750 = vmatprep.subr.bf16.mxu0 0
      %2751 = vmatpush1.bf16.msra.mxu0 %v2382
      %2752 = vmatprep.subr.bf16.mxu0 0
      %2753 = vmatpush1.bf16.msra.mxu0 %v2385
      %2754 = vmatprep.subr.bf16.mxu0 0
      %2755 = vmatpush1.bf16.msra.mxu0 %v2388
      %2756 = vmatprep.subr.bf16.mxu0 0
      %2757 = vmatpush1.bf16.msra.mxu0 0
      %2758 = vmatprep.subr.bf16.mxu0 0
      %2759 = vmatpush1.bf16.msra.mxu0 0
      %2760 = vmatprep.subr.bf16.mxu0 0
      %2761 = vmatpush1.bf16.msra.mxu0 0
      %2762 = vmatprep.subr.bf16.mxu0 0
      %2763 = vmatpush1.bf16.msra.mxu0 0
      %2764 = vmatprep.subr.bf16.mxu0 0
      %2765 = vmatpush1.bf16.msra.mxu0 0
      %2766 = vmatprep.subr.bf16.mxu0 0
      %2767 = vmatpush1.bf16.msra.mxu0 0
      %2768 = vmatprep.subr.bf16.mxu0 0
      %2769 = vmatpush1.bf16.msra.mxu0 0
      %2770 = vmatprep.subr.bf16.mxu0 0
      %2771 = vmatpush1.bf16.msra.mxu0 0
      %2772 = vmatprep.mubr.bf16.mxu0 0
      %2773 = vmatmul.mubr.bf16.gmra.mrb[0].mxu0 %v2732
      %v2774 = vpop.f32.mrb[0].mxu0
      %v2775 = vadd.f32 0.0, %v2774
      %v2776 = vpop.f32.mrb[0].mxu0
      %v2777 = vpop.f32.mrb[0].mxu0
      %v2778 = vadd.f32 0.0, %v2777
      %v2779 = vpop.f32.mrb[0].mxu0
      %2780 = vmatprep.mubr.bf16.mxu0 0
      %2781 = vmatmul.mubr.bf16.gmra.mrb[0].mxu0 %v2733
      %v2782 = vpop.f32.mrb[0].mxu0
      %v2783 = vadd.f32 0.0, %v2782
      %v2784 = vpop.f32.mrb[0].mxu0
      %v2785 = vpop.f32.mrb[0].mxu0
      %v2786 = vadd.f32 0.0, %v2785
      %v2787 = vpop.f32.mrb[0].mxu0
      %2788 = vmatprep.mubr.bf16.mxu0 0
      %2789 = vmatmul.mubr.bf16.gmra.mrb[0].mxu0 %v2734
      %v2790 = vpop.f32.mrb[0].mxu0
      %v2791 = vadd.f32 0.0, %v2790
      %v2792 = vpop.f32.mrb[0].mxu0
      %v2793 = vpop.f32.mrb[0].mxu0
      %v2794 = vadd.f32 0.0, %v2793
      %v2795 = vpop.f32.mrb[0].mxu0
      %2796 = vmatprep.mubr.bf16.mxu0 0
      %2797 = vmatmul.mubr.bf16.gmra.mrb[0].mxu0 %v2735
      %v2798 = vpop.f32.mrb[0].mxu0
      %v2799 = vadd.f32 0.0, %v2798
      %v2800 = vpop.f32.mrb[0].mxu0
      %v2801 = vpop.f32.mrb[0].mxu0
      %v2802 = vadd.f32 0.0, %v2801
      %v2803 = vpop.f32.mrb[0].mxu0
      %2804 = vdwg.mxu0
      %v2805 = vpack.c.bf16 %v2778, %v2775
      %v2806 = vpack.c.bf16 %v2786, %v2783
      %v2807 = vpack.c.bf16 %v2794, %v2791
      %v2808 = vpack.c.bf16 %v2802, %v2799
      %v2810 = vsel %vm1674, %v2301, 0
      %v2813 = vsel %vm1674, %v2302, 0
      %v2816 = vsel %vm1674, %v2303, 0
      %v2819 = vsel %vm1674, %v2304, 0
      %v2822 = vsel %vm1674, %v2305, 0
      %v2825 = vsel %vm1674, %v2306, 0
      %v2828 = vsel %vm1674, %v2307, 0
      %v2831 = vsel %vm1674, %v2308, 0
      %2833 = vmatprep.subr.bf16.mxu0 0
      %2834 = vmatpush1.bf16.msra.mxu0 %v2805
      %2835 = vmatprep.subr.bf16.mxu0 0
      %2836 = vmatpush1.bf16.msra.mxu0 %v2806
      %2837 = vmatprep.subr.bf16.mxu0 0
      %2838 = vmatpush1.bf16.msra.mxu0 %v2807
      %2839 = vmatprep.subr.bf16.mxu0 0
      %2840 = vmatpush1.bf16.msra.mxu0 %v2808
      %2841 = vmatprep.subr.bf16.mxu0 0
      %2842 = vmatpush1.bf16.msra.mxu0 0
      %2843 = vmatprep.subr.bf16.mxu0 0
      %2844 = vmatpush1.bf16.msra.mxu0 0
      %2845 = vmatprep.subr.bf16.mxu0 0
      %2846 = vmatpush1.bf16.msra.mxu0 0
      %2847 = vmatprep.subr.bf16.mxu0 0
      %2848 = vmatpush1.bf16.msra.mxu0 0
      %2849 = vmatprep.subr.bf16.mxu0 0
      %2850 = vmatpush1.bf16.msra.mxu0 0
      %2851 = vmatprep.subr.bf16.mxu0 0
      %2852 = vmatpush1.bf16.msra.mxu0 0
      %2853 = vmatprep.subr.bf16.mxu0 0
      %2854 = vmatpush1.bf16.msra.mxu0 0
      %2855 = vmatprep.subr.bf16.mxu0 0
      %2856 = vmatpush1.bf16.msra.mxu0 0
      %2857 = vmatprep.subr.bf16.mxu0 0
      %2858 = vmatpush1.bf16.msra.mxu0 0
      %2859 = vmatprep.subr.bf16.mxu0 0
      %2860 = vmatpush1.bf16.msra.mxu0 0
      %2861 = vmatprep.subr.bf16.mxu0 0
      %2862 = vmatpush1.bf16.msra.mxu0 0
      %2863 = vmatprep.subr.bf16.mxu0 0
      %2864 = vmatpush1.bf16.msra.mxu0 0
      %2865 = vmatprep.mubr.bf16.mxu0 0
      %2866 = vmatmul.mubr.bf16.gmra.mrb[0].mxu0 %v2810
      %v2867 = vpop.f32.mrb[0].mxu0
      %v2868 = vadd.f32 0.0, %v2867
      %v2869 = vpop.f32.mrb[0].mxu0
      %v2870 = vpop.f32.mrb[0].mxu0
      %v2871 = vadd.f32 0.0, %v2870
      %v2872 = vpop.f32.mrb[0].mxu0
      %2873 = vmatprep.mubr.bf16.mxu0 0
      %2874 = vmatmul.mubr.bf16.gmra.mrb[0].mxu0 %v2813
      %v2875 = vpop.f32.mrb[0].mxu0
      %v2876 = vadd.f32 0.0, %v2875
      %v2877 = vpop.f32.mrb[0].mxu0
      %v2878 = vpop.f32.mrb[0].mxu0
      %v2879 = vadd.f32 0.0, %v2878
      %v2880 = vpop.f32.mrb[0].mxu0
      %2881 = vmatprep.mubr.bf16.mxu0 0
      %2882 = vmatmul.mubr.bf16.gmra.mrb[0].mxu0 %v2816
      %v2883 = vpop.f32.mrb[0].mxu0
      %v2884 = vadd.f32 0.0, %v2883
      %v2885 = vpop.f32.mrb[0].mxu0
      %v2886 = vpop.f32.mrb[0].mxu0
      %v2887 = vadd.f32 0.0, %v2886
      %v2888 = vpop.f32.mrb[0].mxu0
      %2889 = vmatprep.mubr.bf16.mxu0 0
      %2890 = vmatmul.mubr.bf16.gmra.mrb[0].mxu0 %v2819
      %v2891 = vpop.f32.mrb[0].mxu0
      %v2892 = vadd.f32 0.0, %v2891
      %v2893 = vpop.f32.mrb[0].mxu0
      %v2894 = vpop.f32.mrb[0].mxu0
      %v2895 = vadd.f32 0.0, %v2894
      %v2896 = vpop.f32.mrb[0].mxu0
      %2897 = vmatprep.mubr.bf16.mxu0 0
      %2898 = vmatmul.mubr.bf16.gmra.mrb[0].mxu0 %v2822
      %v2899 = vpop.f32.mrb[0].mxu0
      %v2900 = vadd.f32 0.0, %v2899
      %v2901 = vpop.f32.mrb[0].mxu0
      %v2902 = vpop.f32.mrb[0].mxu0
      %v2903 = vadd.f32 0.0, %v2902
      %v2904 = vpop.f32.mrb[0].mxu0
      %2905 = vmatprep.mubr.bf16.mxu0 0
      %2906 = vmatmul.mubr.bf16.gmra.mrb[0].mxu0 %v2825
      %v2907 = vpop.f32.mrb[0].mxu0
      %v2908 = vadd.f32 0.0, %v2907
      %v2909 = vpop.f32.mrb[0].mxu0
      %v2910 = vpop.f32.mrb[0].mxu0
      %v2911 = vadd.f32 0.0, %v2910
      %v2912 = vpop.f32.mrb[0].mxu0
      %2913 = vmatprep.mubr.bf16.mxu0 0
      %2914 = vmatmul.mubr.bf16.gmra.mrb[0].mxu0 %v2828
      %v2915 = vpop.f32.mrb[0].mxu0
      %v2916 = vadd.f32 0.0, %v2915
      %v2917 = vpop.f32.mrb[0].mxu0
      %v2918 = vpop.f32.mrb[0].mxu0
      %v2919 = vadd.f32 0.0, %v2918
      %v2920 = vpop.f32.mrb[0].mxu0
      %2921 = vmatprep.mubr.bf16.mxu0 0
      %2922 = vmatmul.mubr.bf16.gmra.mrb[0].mxu0 %v2831
      %v2923 = vpop.f32.mrb[0].mxu0
      %v2924 = vadd.f32 0.0, %v2923
      %v2925 = vpop.f32.mrb[0].mxu0
      %v2926 = vpop.f32.mrb[0].mxu0
      %v2927 = vadd.f32 0.0, %v2926
      %v2928 = vpop.f32.mrb[0].mxu0
      %2929 = vdwg.mxu0
      %v2930 = vrcp.pop %v2868
      %v2931 = vrcp.pop %v2871
      %v2932 = vrcp.pop %v2876
      %v2933 = vrcp.pop %v2879
      %v2934 = vrcp.pop %v2884
      %v2935 = vrcp.pop %v2887
      %v2936 = vrcp.pop %v2892
      %v2937 = vrcp.pop %v2895
      %v2938 = vrcp.pop %v2900
      %v2939 = vrcp.pop %v2903
      %v2940 = vrcp.pop %v2908
      %v2941 = vrcp.pop %v2911
      %v2942 = vrcp.pop %v2916
      %v2943 = vrcp.pop %v2919
      %v2944 = vrcp.pop %v2924
      %v2945 = vrcp.pop %v2927
      %2947 = vset.pattern.permute.xlu0 32
      %2948 = vperm.xlu0 %2947, %v2930
      %v2949 = vpop.permute.xlu0 %2948
      %2952 = vset.pattern.permute.xlu0 32
      %2953 = vperm.xlu0 %2952, %v2931
      %v2954 = vpop.permute.xlu0 %2953
      %2957 = vset.pattern.permute.xlu0 32
      %2958 = vperm.xlu0 %2957, %v2932
      %v2959 = vpop.permute.xlu0 %2958
      %2962 = vset.pattern.permute.xlu0 32
      %2963 = vperm.xlu0 %2962, %v2933
      %v2964 = vpop.permute.xlu0 %2963
      %2967 = vset.pattern.permute.xlu0 32
      %2968 = vperm.xlu0 %2967, %v2934
      %v2969 = vpop.permute.xlu0 %2968
      %2972 = vset.pattern.permute.xlu0 32
      %2973 = vperm.xlu0 %2972, %v2935
      %v2974 = vpop.permute.xlu0 %2973
      %2977 = vset.pattern.permute.xlu0 32
      %2978 = vperm.xlu0 %2977, %v2936
      %v2979 = vpop.permute.xlu0 %2978
      %2982 = vset.pattern.permute.xlu0 32
      %2983 = vperm.xlu0 %2982, %v2937
      %v2984 = vpop.permute.xlu0 %2983
      %2987 = vset.pattern.permute.xlu0 32
      %2988 = vperm.xlu0 %2987, %v2938
      %v2989 = vpop.permute.xlu0 %2988
      %2992 = vset.pattern.permute.xlu0 32
      %2993 = vperm.xlu0 %2992, %v2939
      %v2994 = vpop.permute.xlu0 %2993
      %2997 = vset.pattern.permute.xlu0 32
      %2998 = vperm.xlu0 %2997, %v2940
      %v2999 = vpop.permute.xlu0 %2998
      %3002 = vset.pattern.permute.xlu0 32
      %3003 = vperm.xlu0 %3002, %v2941
      %v3004 = vpop.permute.xlu0 %3003
      %3007 = vset.pattern.permute.xlu0 32
      %3008 = vperm.xlu0 %3007, %v2942
      %v3009 = vpop.permute.xlu0 %3008
      %3012 = vset.pattern.permute.xlu0 32
      %3013 = vperm.xlu0 %3012, %v2943
      %v3014 = vpop.permute.xlu0 %3013
      %3017 = vset.pattern.permute.xlu0 32
      %3018 = vperm.xlu0 %3017, %v2944
      %v3019 = vpop.permute.xlu0 %3018
      %3022 = vset.pattern.permute.xlu0 32
      %3023 = vperm.xlu0 %3022, %v2945
      %v3024 = vpop.permute.xlu0 %3023
      %v3026 = vmul.f32 %v2868, %v2949
      %v3027 = vmul.f32 %v2871, %v2954
      %v3028 = vmul.f32 %v2876, %v2959
      %v3029 = vmul.f32 %v2879, %v2964
      %v3030 = vmul.f32 %v2884, %v2969
      %v3031 = vmul.f32 %v2887, %v2974
      %v3032 = vmul.f32 %v2892, %v2979
      %v3033 = vmul.f32 %v2895, %v2984
      %v3034 = vmul.f32 %v2900, %v2989
      %v3035 = vmul.f32 %v2903, %v2994
      %v3036 = vmul.f32 %v2908, %v2999
      %v3037 = vmul.f32 %v2911, %v3004
      %v3038 = vmul.f32 %v2916, %v3009
      %v3039 = vmul.f32 %v2919, %v3014
      %v3040 = vmul.f32 %v2924, %v3019
      %v3041 = vmul.f32 %v2927, %v3024
      %3042 = vst.msk [vmem:[%s284 + $0x80] sm:$0xff] %vm895, %v3026
      %3043 = vst.msk [vmem:[%s284 + $0x88] sm:$0xff] %vm895, %v3027
      %3044 = vst.msk [vmem:[%s284 + $0x90] sm:$0xff] %vm895, %v3028
      %3045 = vst.msk [vmem:[%s284 + $0x98] sm:$0xff] %vm895, %v3029
      %3046 = vst.msk [vmem:[%s284 + $0xa0] sm:$0xff] %vm895, %v3030
      %3047 = vst.msk [vmem:[%s284 + $0xa8] sm:$0xff] %vm895, %v3031
      %3048 = vst.msk [vmem:[%s284 + $0xb0] sm:$0xff] %vm895, %v3032
      %3049 = vst.msk [vmem:[%s284 + $0xb8] sm:$0xff] %vm895, %v3033
      %3050 = vst.msk [vmem:[%s284 + $0xc0] sm:$0xff] %vm895, %v3034
      %3051 = vst.msk [vmem:[%s284 + $0xc8] sm:$0xff] %vm895, %v3035
      %3052 = vst.msk [vmem:[%s284 + $0xd0] sm:$0xff] %vm895, %v3036
      %3053 = vst.msk [vmem:[%s284 + $0xd8] sm:$0xff] %vm895, %v3037
      %3054 = vst.msk [vmem:[%s284 + $0xe0] sm:$0xff] %vm895, %v3038
      %3055 = vst.msk [vmem:[%s284 + $0xe8] sm:$0xff] %vm895, %v3039
      %3056 = vst.msk [vmem:[%s284 + $0xf0] sm:$0xff] %vm895, %v3040
      %3057 = vst.msk [vmem:[%s284 + $0xf8] sm:$0xff] %vm895, %v3041
      %p3058 = scmp.lt.s32.totalorder %s16, 1
      %s3059 = scalar_select %p3058, %s16, 1
      %s3060 = smul.addr %s3059, 32
      %s3061 = smul.addr %s3060, 8
      %s3062 = scalar_lea.vmem %s5, %s3061
      // Predicated region
      $region41: #{tpu_custom_call.1} parent=39 // pred_check
        %p3063 = pneg %p159
      $region42: #{tpu_custom_call.1} parent=39 // pred_check_branch
        %3065 = sbr.rel (%p3063) target = $region44
      $region43: #{tpu_custom_call.1} parent=39 // pred_region
        _
      $region44: #{tpu_custom_call.1} parent=39 // pred_fallthru
        _
    $region40: #{tpu_custom_call.1} parent=5 // pred_fallthru
      _
    %p3066 = scmp.le.s32.totalorder 2, %s11
    // Predicated region
    $region45: #{tpu_custom_call.1} parent=5 // pred_check
      %p3067 = pneg %p3066
    $region46: #{tpu_custom_call.1} parent=5 // pred_check_branch
      %3069 = sbr.rel (%p3067) target = $region48
    $region47: #{tpu_custom_call.1} parent=5 // pred_region
      %s3070 = ssub.s32 %s11, 2
      // Predicated region
      $region49: #{tpu_custom_call.1} parent=47 // pred_check
        %p3071 = pneg %p165
      $region50: #{tpu_custom_call.1} parent=47 // pred_check_branch
        %3073 = sbr.rel (%p3071) target = $region52
      $region51: #{tpu_custom_call.1} parent=47 // pred_region
        %p3074 = scmp.lt.s32.totalorder %s17, 1
        %s3075 = scalar_select %p3074, %s17, 1
        %s3076 = smul.addr %s3075, 32
        %s3077 = smul.addr %s3076, 8
        %s3078 = scalar_lea.vmem %s5, %s3077
      $region52: #{tpu_custom_call.1} parent=47 // pred_fallthru
        _
    $region48: #{tpu_custom_call.1} parent=5 // pred_fallthru
      _
  $region6: #{tpu_custom_call.1} parent=0 // loop_footer
    %s15 = sadd.s32 1, %s11
  $region7: #{tpu_custom_call.1} parent=0 // loop_footer_branch
    %10 = sbr.rel target = $region3
  $region8: #{tpu_custom_call.1} parent=0 // loop_exit
    _

</llo_original>
